<compile_context>
chip_gen: v5e
topology: v5e:2x2
jax: 0.10.0
libtpu: 0.0.40
codegen_flags: <defaults>
</compile_context>

<pallas_src>
import functools

import jax
import jax.numpy as jnp
import numpy as np
from jax.experimental import pallas as pl
from jax.experimental.pallas import tpu as pltpu


def _downsample_kernel(w_ref, planes_ref, o_ref, *, C, Cout, Ho, Wo):
    """One batch of the stride-2 3x3 conv + LeakyReLU, all Cout at once.

    w_ref      : SMEM flat (Cout*C*9,) f32, index = (co*C + c)*9 + kh*3 + kw
    planes_ref : VMEM bf16 (1, 4*C, Ho+1, Wo+1) parity planes of the padded
                 input for this batch; plane p = 2*(kh%2) + (kw%2), channel c
                 lives at row p*C + c.
    o_ref      : (1, Cout, Ho, Wo) f32 output block (NCHW slice for batch n).
    """
    acc = [jnp.zeros((Ho, Wo), jnp.float32) for _ in range(Cout)]

    for kh in range(3):
        rs = kh // 2                      # row offset inside the parity plane
        for kw in range(3):
            cs = kw // 2                  # col offset inside the parity plane
            p = 2 * (kh % 2) + (kw % 2)   # which parity plane
            for c in range(C):
                # (Ho, Wo) window: loaded + cast once, reused for every co.
                tap = planes_ref[0, p * C + c,
                                 rs:rs + Ho, cs:cs + Wo].astype(jnp.float32)
                for co in range(Cout):
                    w = w_ref[(co * C + c) * 9 + kh * 3 + kw]   # SMEM scalar
                    acc[co] = acc[co] + w * tap

    for co in range(Cout):
        a = acc[co]
        o_ref[0, co] = jnp.where(a > 0, a, 0.1 * a).astype(o_ref.dtype)


@jax.jit
def downsample_forward(x_nchw, weight_oihw):
    """x_nchw: (N, C, H, W) f32, weight_oihw: (Cout, C, 3, 3) f32 -> (N, Cout, Ho, Wo) f32."""
    N, C, H, W = x_nchw.shape
    Cout = weight_oihw.shape[0]
    Ho = (H - 1) // 2 + 1
    Wo = (W - 1) // 2 + 1

    # Parity planes of the (conceptually) zero-padded image, built directly as
    # pad-of-strided-slice (no materialized padded intermediate).  Even padded
    # row/col indices map to {zero pad, x rows/cols 1,3,...}; odd padded
    # indices map to x rows/cols 0,2,... (always in bounds).  All planes are
    # padded to a common (Ho+1, Wo+1); the extra rows/cols are never read.
    xb = x_nchw.astype(jnp.bfloat16)                  # bf16 input stream
    pr = Ho - H // 2                                  # bottom even-row pad (0 or 1)
    pc = Wo - W // 2                                  # right even-col pad (0 or 1)
    xe = xb[:, :, 1::2, :]                            # rows under even padded idx
    xo = xb[:, :, 0::2, :]                            # rows under odd padded idx
    nn = ((0, 0), (0, 0))
    ee = jnp.pad(xe[:, :, :, 1::2], nn + ((1, pr), (1, pc)))
    eo = jnp.pad(xe[:, :, :, 0::2], nn + ((1, pr), (0, 1)))
    oe = jnp.pad(xo[:, :, :, 1::2], nn + ((0, 1), (1, pc)))
    oo = jnp.pad(xo[:, :, :, 0::2], nn + ((0, 1), (0, 1)))
    planes = jnp.concatenate([ee, eo, oe, oo], axis=1)   # (N, 4*C, Ho+1, Wo+1) bf16

    w_flat = weight_oihw.astype(jnp.float32).reshape(-1)  # (Cout*C*9,) -> SMEM

    kernel = functools.partial(_downsample_kernel, C=C, Cout=Cout, Ho=Ho, Wo=Wo)

    flops = 2 * N * Cout * C * 9 * Ho * Wo
    bytes_accessed = (int(planes.size) * 2
                      + int(w_flat.size) * 4
                      + N * Cout * Ho * Wo * 4)

    out = pl.pallas_call(
        kernel,
        out_shape=jax.ShapeDtypeStruct((N, Cout, Ho, Wo), jnp.float32),
        grid_spec=pltpu.PrefetchScalarGridSpec(
            num_scalar_prefetch=0,
            grid=(N,),
            in_specs=[
                pl.BlockSpec(memory_space=pltpu.MemorySpace.SMEM),   # weights
                pl.BlockSpec((1, 4 * C, Ho + 1, Wo + 1),
                             lambda n: (n, 0, 0, 0)),                # parity planes
            ],
            out_specs=pl.BlockSpec((1, Cout, Ho, Wo), lambda n: (n, 0, 0, 0)),
        ),
        compiler_params=pltpu.CompilerParams(
            dimension_semantics=("parallel",),
            vmem_limit_bytes=32 * 1024 * 1024,
        ),
        cost_estimate=pl.CostEstimate(
            flops=flops, transcendentals=0, bytes_accessed=bytes_accessed),
    )(w_flat, planes)

    return out   # already NCHW; no trailing transpose


def _reference(x_nchw, weight_oihw):
    y = jax.lax.conv_general_dilated(
        x_nchw, weight_oihw,
        window_strides=(2, 2), padding=((1, 1), (1, 1)),
        dimension_numbers=("NCHW", "OIHW", "NCHW"))
    return jnp.where(y > 0, y, 0.1 * y)


if __name__ == "__main__":
    key = jax.random.PRNGKey(0)
    kx, kw = jax.random.split(key)

    N, C, H, W = 2, 4, 16, 16
    x = jax.random.normal(kx, (N, C, H, W), dtype=jnp.float32)
    # Deterministic synthetic Conv2d weight (Cout=C, Cin=C, 3, 3), bias=False.
    fan_in = C * 3 * 3
    weight = jax.random.normal(kw, (C, C, 3, 3), dtype=jnp.float32) / np.sqrt(fan_in)

    out = jax.block_until_ready(downsample_forward(x, weight))
    ref = jax.block_until_ready(_reference(x, weight))

    Ho = (H - 1) // 2 + 1
    Wo = (W - 1) // 2 + 1
    assert out.shape == (N, C, Ho, Wo), out.shape
    # bf16 input stream -> loosened tolerance (f32 weights, f32 accumulation).
    np.testing.assert_allclose(np.asarray(out), np.asarray(ref), rtol=2e-2, atol=2e-2)

    print("KERNEL_OK")
</pallas_src>

<mosaic_0001>
module attributes {stable_mosaic.version = 11 : i64} {
  func.func @_downsample_kernel(%arg0: i32, %arg1: memref<144xf32, #tpu.memory_space<smem>>, %arg2: memref<1x16x9x9xbf16, #tpu.memory_space<vmem>>, %arg3: memref<1x4x8x8xf32, #tpu.memory_space<vmem>>) attributes {dimension_semantics = [#tpu.dimension_semantics<parallel>], iteration_bounds = array<i64: 2>, scalar_prefetch = 0 : i64, scratch_operands = 0 : i64, tpu.core_type = #tpu.core_type<tc>, window_params = [{transform_indices = @transform_0, window_bounds = array<i64: 144>}, {transform_indices = @transform_1, window_bounds = array<i64: 1, 16, 9, 9>}, {transform_indices = @transform_2, window_bounds = array<i64: 1, 4, 8, 8>}]} {
    %cst = arith.constant 0.000000e+00 : f32
    %0 = vector.broadcast %cst : f32 to vector<8x8xf32>
    %cst_0 = arith.constant 0.000000e+00 : f32
    %1 = vector.broadcast %cst_0 : f32 to vector<8x8xf32>
    %cst_1 = arith.constant 0.000000e+00 : f32
    %2 = vector.broadcast %cst_1 : f32 to vector<8x8xf32>
    %cst_2 = arith.constant 0.000000e+00 : f32
    %3 = vector.broadcast %cst_2 : f32 to vector<8x8xf32>
    %c0 = arith.constant 0 : index
    %c0_3 = arith.constant 0 : index
    %c0_4 = arith.constant 0 : index
    %c0_5 = arith.constant 0 : index
    %4 = vector.load %arg2[%c0, %c0_3, %c0_4, %c0_5] : memref<1x16x9x9xbf16, #tpu.memory_space<vmem>>, vector<1x1x8x8xbf16>
    %5 = vector.shape_cast %4 : vector<1x1x8x8xbf16> to vector<8x8xbf16>
    %6 = arith.extf %5 : vector<8x8xbf16> to vector<8x8xf32>
    %c0_6 = arith.constant 0 : index
    %7 = memref.load %arg1[%c0_6] : memref<144xf32, #tpu.memory_space<smem>>
    %8 = vector.broadcast %7 : f32 to vector<8x8xf32>
    %9 = arith.mulf %8, %6 : vector<8x8xf32>
    %10 = arith.addf %0, %9 : vector<8x8xf32>
    %c36 = arith.constant 36 : index
    %11 = memref.load %arg1[%c36] : memref<144xf32, #tpu.memory_space<smem>>
    %12 = vector.broadcast %11 : f32 to vector<8x8xf32>
    %13 = arith.mulf %12, %6 : vector<8x8xf32>
    %14 = arith.addf %1, %13 : vector<8x8xf32>
    %c72 = arith.constant 72 : index
    %15 = memref.load %arg1[%c72] : memref<144xf32, #tpu.memory_space<smem>>
    %16 = vector.broadcast %15 : f32 to vector<8x8xf32>
    %17 = arith.mulf %16, %6 : vector<8x8xf32>
    %18 = arith.addf %2, %17 : vector<8x8xf32>
    %c108 = arith.constant 108 : index
    %19 = memref.load %arg1[%c108] : memref<144xf32, #tpu.memory_space<smem>>
    %20 = vector.broadcast %19 : f32 to vector<8x8xf32>
    %21 = arith.mulf %20, %6 : vector<8x8xf32>
    %22 = arith.addf %3, %21 : vector<8x8xf32>
    %c0_7 = arith.constant 0 : index
    %c1 = arith.constant 1 : index
    %c0_8 = arith.constant 0 : index
    %c0_9 = arith.constant 0 : index
    %23 = vector.load %arg2[%c0_7, %c1, %c0_8, %c0_9] : memref<1x16x9x9xbf16, #tpu.memory_space<vmem>>, vector<1x1x8x8xbf16>
    %24 = vector.shape_cast %23 : vector<1x1x8x8xbf16> to vector<8x8xbf16>
    %25 = arith.extf %24 : vector<8x8xbf16> to vector<8x8xf32>
    %c9 = arith.constant 9 : index
    %26 = memref.load %arg1[%c9] : memref<144xf32, #tpu.memory_space<smem>>
    %27 = vector.broadcast %26 : f32 to vector<8x8xf32>
    %28 = arith.mulf %27, %25 : vector<8x8xf32>
    %29 = arith.addf %10, %28 : vector<8x8xf32>
    %c45 = arith.constant 45 : index
    %30 = memref.load %arg1[%c45] : memref<144xf32, #tpu.memory_space<smem>>
    %31 = vector.broadcast %30 : f32 to vector<8x8xf32>
    %32 = arith.mulf %31, %25 : vector<8x8xf32>
    %33 = arith.addf %14, %32 : vector<8x8xf32>
    %c81 = arith.constant 81 : index
    %34 = memref.load %arg1[%c81] : memref<144xf32, #tpu.memory_space<smem>>
    %35 = vector.broadcast %34 : f32 to vector<8x8xf32>
    %36 = arith.mulf %35, %25 : vector<8x8xf32>
    %37 = arith.addf %18, %36 : vector<8x8xf32>
    %c117 = arith.constant 117 : index
    %38 = memref.load %arg1[%c117] : memref<144xf32, #tpu.memory_space<smem>>
    %39 = vector.broadcast %38 : f32 to vector<8x8xf32>
    %40 = arith.mulf %39, %25 : vector<8x8xf32>
    %41 = arith.addf %22, %40 : vector<8x8xf32>
    %c0_10 = arith.constant 0 : index
    %c2 = arith.constant 2 : index
    %c0_11 = arith.constant 0 : index
    %c0_12 = arith.constant 0 : index
    %42 = vector.load %arg2[%c0_10, %c2, %c0_11, %c0_12] : memref<1x16x9x9xbf16, #tpu.memory_space<vmem>>, vector<1x1x8x8xbf16>
    %43 = vector.shape_cast %42 : vector<1x1x8x8xbf16> to vector<8x8xbf16>
    %44 = arith.extf %43 : vector<8x8xbf16> to vector<8x8xf32>
    %c18 = arith.constant 18 : index
    %45 = memref.load %arg1[%c18] : memref<144xf32, #tpu.memory_space<smem>>
    %46 = vector.broadcast %45 : f32 to vector<8x8xf32>
    %47 = arith.mulf %46, %44 : vector<8x8xf32>
    %48 = arith.addf %29, %47 : vector<8x8xf32>
    %c54 = arith.constant 54 : index
    %49 = memref.load %arg1[%c54] : memref<144xf32, #tpu.memory_space<smem>>
    %50 = vector.broadcast %49 : f32 to vector<8x8xf32>
    %51 = arith.mulf %50, %44 : vector<8x8xf32>
    %52 = arith.addf %33, %51 : vector<8x8xf32>
    %c90 = arith.constant 90 : index
    %53 = memref.load %arg1[%c90] : memref<144xf32, #tpu.memory_space<smem>>
    %54 = vector.broadcast %53 : f32 to vector<8x8xf32>
    %55 = arith.mulf %54, %44 : vector<8x8xf32>
    %56 = arith.addf %37, %55 : vector<8x8xf32>
    %c126 = arith.constant 126 : index
    %57 = memref.load %arg1[%c126] : memref<144xf32, #tpu.memory_space<smem>>
    %58 = vector.broadcast %57 : f32 to vector<8x8xf32>
    %59 = arith.mulf %58, %44 : vector<8x8xf32>
    %60 = arith.addf %41, %59 : vector<8x8xf32>
    %c0_13 = arith.constant 0 : index
    %c3 = arith.constant 3 : index
    %c0_14 = arith.constant 0 : index
    %c0_15 = arith.constant 0 : index
    %61 = vector.load %arg2[%c0_13, %c3, %c0_14, %c0_15] : memref<1x16x9x9xbf16, #tpu.memory_space<vmem>>, vector<1x1x8x8xbf16>
    %62 = vector.shape_cast %61 : vector<1x1x8x8xbf16> to vector<8x8xbf16>
    %63 = arith.extf %62 : vector<8x8xbf16> to vector<8x8xf32>
    %c27 = arith.constant 27 : index
    %64 = memref.load %arg1[%c27] : memref<144xf32, #tpu.memory_space<smem>>
    %65 = vector.broadcast %64 : f32 to vector<8x8xf32>
    %66 = arith.mulf %65, %63 : vector<8x8xf32>
    %67 = arith.addf %48, %66 : vector<8x8xf32>
    %c63 = arith.constant 63 : index
    %68 = memref.load %arg1[%c63] : memref<144xf32, #tpu.memory_space<smem>>
    %69 = vector.broadcast %68 : f32 to vector<8x8xf32>
    %70 = arith.mulf %69, %63 : vector<8x8xf32>
    %71 = arith.addf %52, %70 : vector<8x8xf32>
    %c99 = arith.constant 99 : index
    %72 = memref.load %arg1[%c99] : memref<144xf32, #tpu.memory_space<smem>>
    %73 = vector.broadcast %72 : f32 to vector<8x8xf32>
    %74 = arith.mulf %73, %63 : vector<8x8xf32>
    %75 = arith.addf %56, %74 : vector<8x8xf32>
    %c135 = arith.constant 135 : index
    %76 = memref.load %arg1[%c135] : memref<144xf32, #tpu.memory_space<smem>>
    %77 = vector.broadcast %76 : f32 to vector<8x8xf32>
    %78 = arith.mulf %77, %63 : vector<8x8xf32>
    %79 = arith.addf %60, %78 : vector<8x8xf32>
    %c0_16 = arith.constant 0 : index
    %c4 = arith.constant 4 : index
    %c0_17 = arith.constant 0 : index
    %c0_18 = arith.constant 0 : index
    %80 = vector.load %arg2[%c0_16, %c4, %c0_17, %c0_18] : memref<1x16x9x9xbf16, #tpu.memory_space<vmem>>, vector<1x1x8x8xbf16>
    %81 = vector.shape_cast %80 : vector<1x1x8x8xbf16> to vector<8x8xbf16>
    %82 = arith.extf %81 : vector<8x8xbf16> to vector<8x8xf32>
    %c1_19 = arith.constant 1 : index
    %83 = memref.load %arg1[%c1_19] : memref<144xf32, #tpu.memory_space<smem>>
    %84 = vector.broadcast %83 : f32 to vector<8x8xf32>
    %85 = arith.mulf %84, %82 : vector<8x8xf32>
    %86 = arith.addf %67, %85 : vector<8x8xf32>
    %c37 = arith.constant 37 : index
    %87 = memref.load %arg1[%c37] : memref<144xf32, #tpu.memory_space<smem>>
    %88 = vector.broadcast %87 : f32 to vector<8x8xf32>
    %89 = arith.mulf %88, %82 : vector<8x8xf32>
    %90 = arith.addf %71, %89 : vector<8x8xf32>
    %c73 = arith.constant 73 : index
    %91 = memref.load %arg1[%c73] : memref<144xf32, #tpu.memory_space<smem>>
    %92 = vector.broadcast %91 : f32 to vector<8x8xf32>
    %93 = arith.mulf %92, %82 : vector<8x8xf32>
    %94 = arith.addf %75, %93 : vector<8x8xf32>
    %c109 = arith.constant 109 : index
    %95 = memref.load %arg1[%c109] : memref<144xf32, #tpu.memory_space<smem>>
    %96 = vector.broadcast %95 : f32 to vector<8x8xf32>
    %97 = arith.mulf %96, %82 : vector<8x8xf32>
    %98 = arith.addf %79, %97 : vector<8x8xf32>
    %c0_20 = arith.constant 0 : index
    %c5 = arith.constant 5 : index
    %c0_21 = arith.constant 0 : index
    %c0_22 = arith.constant 0 : index
    %99 = vector.load %arg2[%c0_20, %c5, %c0_21, %c0_22] : memref<1x16x9x9xbf16, #tpu.memory_space<vmem>>, vector<1x1x8x8xbf16>
    %100 = vector.shape_cast %99 : vector<1x1x8x8xbf16> to vector<8x8xbf16>
    %101 = arith.extf %100 : vector<8x8xbf16> to vector<8x8xf32>
    %c10 = arith.constant 10 : index
    %102 = memref.load %arg1[%c10] : memref<144xf32, #tpu.memory_space<smem>>
    %103 = vector.broadcast %102 : f32 to vector<8x8xf32>
    %104 = arith.mulf %103, %101 : vector<8x8xf32>
    %105 = arith.addf %86, %104 : vector<8x8xf32>
    %c46 = arith.constant 46 : index
    %106 = memref.load %arg1[%c46] : memref<144xf32, #tpu.memory_space<smem>>
    %107 = vector.broadcast %106 : f32 to vector<8x8xf32>
    %108 = arith.mulf %107, %101 : vector<8x8xf32>
    %109 = arith.addf %90, %108 : vector<8x8xf32>
    %c82 = arith.constant 82 : index
    %110 = memref.load %arg1[%c82] : memref<144xf32, #tpu.memory_space<smem>>
    %111 = vector.broadcast %110 : f32 to vector<8x8xf32>
    %112 = arith.mulf %111, %101 : vector<8x8xf32>
    %113 = arith.addf %94, %112 : vector<8x8xf32>
    %c118 = arith.constant 118 : index
    %114 = memref.load %arg1[%c118] : memref<144xf32, #tpu.memory_space<smem>>
    %115 = vector.broadcast %114 : f32 to vector<8x8xf32>
    %116 = arith.mulf %115, %101 : vector<8x8xf32>
    %117 = arith.addf %98, %116 : vector<8x8xf32>
    %c0_23 = arith.constant 0 : index
    %c6 = arith.constant 6 : index
    %c0_24 = arith.constant 0 : index
    %c0_25 = arith.constant 0 : index
    %118 = vector.load %arg2[%c0_23, %c6, %c0_24, %c0_25] : memref<1x16x9x9xbf16, #tpu.memory_space<vmem>>, vector<1x1x8x8xbf16>
    %119 = vector.shape_cast %118 : vector<1x1x8x8xbf16> to vector<8x8xbf16>
    %120 = arith.extf %119 : vector<8x8xbf16> to vector<8x8xf32>
    %c19 = arith.constant 19 : index
    %121 = memref.load %arg1[%c19] : memref<144xf32, #tpu.memory_space<smem>>
    %122 = vector.broadcast %121 : f32 to vector<8x8xf32>
    %123 = arith.mulf %122, %120 : vector<8x8xf32>
    %124 = arith.addf %105, %123 : vector<8x8xf32>
    %c55 = arith.constant 55 : index
    %125 = memref.load %arg1[%c55] : memref<144xf32, #tpu.memory_space<smem>>
    %126 = vector.broadcast %125 : f32 to vector<8x8xf32>
    %127 = arith.mulf %126, %120 : vector<8x8xf32>
    %128 = arith.addf %109, %127 : vector<8x8xf32>
    %c91 = arith.constant 91 : index
    %129 = memref.load %arg1[%c91] : memref<144xf32, #tpu.memory_space<smem>>
    %130 = vector.broadcast %129 : f32 to vector<8x8xf32>
    %131 = arith.mulf %130, %120 : vector<8x8xf32>
    %132 = arith.addf %113, %131 : vector<8x8xf32>
    %c127 = arith.constant 127 : index
    %133 = memref.load %arg1[%c127] : memref<144xf32, #tpu.memory_space<smem>>
    %134 = vector.broadcast %133 : f32 to vector<8x8xf32>
    %135 = arith.mulf %134, %120 : vector<8x8xf32>
    %136 = arith.addf %117, %135 : vector<8x8xf32>
    %c0_26 = arith.constant 0 : index
    %c7 = arith.constant 7 : index
    %c0_27 = arith.constant 0 : index
    %c0_28 = arith.constant 0 : index
    %137 = vector.load %arg2[%c0_26, %c7, %c0_27, %c0_28] : memref<1x16x9x9xbf16, #tpu.memory_space<vmem>>, vector<1x1x8x8xbf16>
    %138 = vector.shape_cast %137 : vector<1x1x8x8xbf16> to vector<8x8xbf16>
    %139 = arith.extf %138 : vector<8x8xbf16> to vector<8x8xf32>
    %c28 = arith.constant 28 : index
    %140 = memref.load %arg1[%c28] : memref<144xf32, #tpu.memory_space<smem>>
    %141 = vector.broadcast %140 : f32 to vector<8x8xf32>
    %142 = arith.mulf %141, %139 : vector<8x8xf32>
    %143 = arith.addf %124, %142 : vector<8x8xf32>
    %c64 = arith.constant 64 : index
    %144 = memref.load %arg1[%c64] : memref<144xf32, #tpu.memory_space<smem>>
    %145 = vector.broadcast %144 : f32 to vector<8x8xf32>
    %146 = arith.mulf %145, %139 : vector<8x8xf32>
    %147 = arith.addf %128, %146 : vector<8x8xf32>
    %c100 = arith.constant 100 : index
    %148 = memref.load %arg1[%c100] : memref<144xf32, #tpu.memory_space<smem>>
    %149 = vector.broadcast %148 : f32 to vector<8x8xf32>
    %150 = arith.mulf %149, %139 : vector<8x8xf32>
    %151 = arith.addf %132, %150 : vector<8x8xf32>
    %c136 = arith.constant 136 : index
    %152 = memref.load %arg1[%c136] : memref<144xf32, #tpu.memory_space<smem>>
    %153 = vector.broadcast %152 : f32 to vector<8x8xf32>
    %154 = arith.mulf %153, %139 : vector<8x8xf32>
    %155 = arith.addf %136, %154 : vector<8x8xf32>
    %c0_29 = arith.constant 0 : index
    %c0_30 = arith.constant 0 : index
    %c0_31 = arith.constant 0 : index
    %c1_32 = arith.constant 1 : index
    %156 = vector.load %arg2[%c0_29, %c0_30, %c0_31, %c1_32] : memref<1x16x9x9xbf16, #tpu.memory_space<vmem>>, vector<1x1x8x8xbf16>
    %157 = vector.shape_cast %156 : vector<1x1x8x8xbf16> to vector<8x8xbf16>
    %158 = arith.extf %157 : vector<8x8xbf16> to vector<8x8xf32>
    %c2_33 = arith.constant 2 : index
    %159 = memref.load %arg1[%c2_33] : memref<144xf32, #tpu.memory_space<smem>>
    %160 = vector.broadcast %159 : f32 to vector<8x8xf32>
    %161 = arith.mulf %160, %158 : vector<8x8xf32>
    %162 = arith.addf %143, %161 : vector<8x8xf32>
    %c38 = arith.constant 38 : index
    %163 = memref.load %arg1[%c38] : memref<144xf32, #tpu.memory_space<smem>>
    %164 = vector.broadcast %163 : f32 to vector<8x8xf32>
    %165 = arith.mulf %164, %158 : vector<8x8xf32>
    %166 = arith.addf %147, %165 : vector<8x8xf32>
    %c74 = arith.constant 74 : index
    %167 = memref.load %arg1[%c74] : memref<144xf32, #tpu.memory_space<smem>>
    %168 = vector.broadcast %167 : f32 to vector<8x8xf32>
    %169 = arith.mulf %168, %158 : vector<8x8xf32>
    %170 = arith.addf %151, %169 : vector<8x8xf32>
    %c110 = arith.constant 110 : index
    %171 = memref.load %arg1[%c110] : memref<144xf32, #tpu.memory_space<smem>>
    %172 = vector.broadcast %171 : f32 to vector<8x8xf32>
    %173 = arith.mulf %172, %158 : vector<8x8xf32>
    %174 = arith.addf %155, %173 : vector<8x8xf32>
    %c0_34 = arith.constant 0 : index
    %c1_35 = arith.constant 1 : index
    %c0_36 = arith.constant 0 : index
    %c1_37 = arith.constant 1 : index
    %175 = vector.load %arg2[%c0_34, %c1_35, %c0_36, %c1_37] : memref<1x16x9x9xbf16, #tpu.memory_space<vmem>>, vector<1x1x8x8xbf16>
    %176 = vector.shape_cast %175 : vector<1x1x8x8xbf16> to vector<8x8xbf16>
    %177 = arith.extf %176 : vector<8x8xbf16> to vector<8x8xf32>
    %c11 = arith.constant 11 : index
    %178 = memref.load %arg1[%c11] : memref<144xf32, #tpu.memory_space<smem>>
    %179 = vector.broadcast %178 : f32 to vector<8x8xf32>
    %180 = arith.mulf %179, %177 : vector<8x8xf32>
    %181 = arith.addf %162, %180 : vector<8x8xf32>
    %c47 = arith.constant 47 : index
    %182 = memref.load %arg1[%c47] : memref<144xf32, #tpu.memory_space<smem>>
    %183 = vector.broadcast %182 : f32 to vector<8x8xf32>
    %184 = arith.mulf %183, %177 : vector<8x8xf32>
    %185 = arith.addf %166, %184 : vector<8x8xf32>
    %c83 = arith.constant 83 : index
    %186 = memref.load %arg1[%c83] : memref<144xf32, #tpu.memory_space<smem>>
    %187 = vector.broadcast %186 : f32 to vector<8x8xf32>
    %188 = arith.mulf %187, %177 : vector<8x8xf32>
    %189 = arith.addf %170, %188 : vector<8x8xf32>
    %c119 = arith.constant 119 : index
    %190 = memref.load %arg1[%c119] : memref<144xf32, #tpu.memory_space<smem>>
    %191 = vector.broadcast %190 : f32 to vector<8x8xf32>
    %192 = arith.mulf %191, %177 : vector<8x8xf32>
    %193 = arith.addf %174, %192 : vector<8x8xf32>
    %c0_38 = arith.constant 0 : index
    %c2_39 = arith.constant 2 : index
    %c0_40 = arith.constant 0 : index
    %c1_41 = arith.constant 1 : index
    %194 = vector.load %arg2[%c0_38, %c2_39, %c0_40, %c1_41] : memref<1x16x9x9xbf16, #tpu.memory_space<vmem>>, vector<1x1x8x8xbf16>
    %195 = vector.shape_cast %194 : vector<1x1x8x8xbf16> to vector<8x8xbf16>
    %196 = arith.extf %195 : vector<8x8xbf16> to vector<8x8xf32>
    %c20 = arith.constant 20 : index
    %197 = memref.load %arg1[%c20] : memref<144xf32, #tpu.memory_space<smem>>
    %198 = vector.broadcast %197 : f32 to vector<8x8xf32>
    %199 = arith.mulf %198, %196 : vector<8x8xf32>
    %200 = arith.addf %181, %199 : vector<8x8xf32>
    %c56 = arith.constant 56 : index
    %201 = memref.load %arg1[%c56] : memref<144xf32, #tpu.memory_space<smem>>
    %202 = vector.broadcast %201 : f32 to vector<8x8xf32>
    %203 = arith.mulf %202, %196 : vector<8x8xf32>
    %204 = arith.addf %185, %203 : vector<8x8xf32>
    %c92 = arith.constant 92 : index
    %205 = memref.load %arg1[%c92] : memref<144xf32, #tpu.memory_space<smem>>
    %206 = vector.broadcast %205 : f32 to vector<8x8xf32>
    %207 = arith.mulf %206, %196 : vector<8x8xf32>
    %208 = arith.addf %189, %207 : vector<8x8xf32>
    %c128 = arith.constant 128 : index
    %209 = memref.load %arg1[%c128] : memref<144xf32, #tpu.memory_space<smem>>
    %210 = vector.broadcast %209 : f32 to vector<8x8xf32>
    %211 = arith.mulf %210, %196 : vector<8x8xf32>
    %212 = arith.addf %193, %211 : vector<8x8xf32>
    %c0_42 = arith.constant 0 : index
    %c3_43 = arith.constant 3 : index
    %c0_44 = arith.constant 0 : index
    %c1_45 = arith.constant 1 : index
    %213 = vector.load %arg2[%c0_42, %c3_43, %c0_44, %c1_45] : memref<1x16x9x9xbf16, #tpu.memory_space<vmem>>, vector<1x1x8x8xbf16>
    %214 = vector.shape_cast %213 : vector<1x1x8x8xbf16> to vector<8x8xbf16>
    %215 = arith.extf %214 : vector<8x8xbf16> to vector<8x8xf32>
    %c29 = arith.constant 29 : index
    %216 = memref.load %arg1[%c29] : memref<144xf32, #tpu.memory_space<smem>>
    %217 = vector.broadcast %216 : f32 to vector<8x8xf32>
    %218 = arith.mulf %217, %215 : vector<8x8xf32>
    %219 = arith.addf %200, %218 : vector<8x8xf32>
    %c65 = arith.constant 65 : index
    %220 = memref.load %arg1[%c65] : memref<144xf32, #tpu.memory_space<smem>>
    %221 = vector.broadcast %220 : f32 to vector<8x8xf32>
    %222 = arith.mulf %221, %215 : vector<8x8xf32>
    %223 = arith.addf %204, %222 : vector<8x8xf32>
    %c101 = arith.constant 101 : index
    %224 = memref.load %arg1[%c101] : memref<144xf32, #tpu.memory_space<smem>>
    %225 = vector.broadcast %224 : f32 to vector<8x8xf32>
    %226 = arith.mulf %225, %215 : vector<8x8xf32>
    %227 = arith.addf %208, %226 : vector<8x8xf32>
    %c137 = arith.constant 137 : index
    %228 = memref.load %arg1[%c137] : memref<144xf32, #tpu.memory_space<smem>>
    %229 = vector.broadcast %228 : f32 to vector<8x8xf32>
    %230 = arith.mulf %229, %215 : vector<8x8xf32>
    %231 = arith.addf %212, %230 : vector<8x8xf32>
    %c0_46 = arith.constant 0 : index
    %c8 = arith.constant 8 : index
    %c0_47 = arith.constant 0 : index
    %c0_48 = arith.constant 0 : index
    %232 = vector.load %arg2[%c0_46, %c8, %c0_47, %c0_48] : memref<1x16x9x9xbf16, #tpu.memory_space<vmem>>, vector<1x1x8x8xbf16>
    %233 = vector.shape_cast %232 : vector<1x1x8x8xbf16> to vector<8x8xbf16>
    %234 = arith.extf %233 : vector<8x8xbf16> to vector<8x8xf32>
    %c3_49 = arith.constant 3 : index
    %235 = memref.load %arg1[%c3_49] : memref<144xf32, #tpu.memory_space<smem>>
    %236 = vector.broadcast %235 : f32 to vector<8x8xf32>
    %237 = arith.mulf %236, %234 : vector<8x8xf32>
    %238 = arith.addf %219, %237 : vector<8x8xf32>
    %c39 = arith.constant 39 : index
    %239 = memref.load %arg1[%c39] : memref<144xf32, #tpu.memory_space<smem>>
    %240 = vector.broadcast %239 : f32 to vector<8x8xf32>
    %241 = arith.mulf %240, %234 : vector<8x8xf32>
    %242 = arith.addf %223, %241 : vector<8x8xf32>
    %c75 = arith.constant 75 : index
    %243 = memref.load %arg1[%c75] : memref<144xf32, #tpu.memory_space<smem>>
    %244 = vector.broadcast %243 : f32 to vector<8x8xf32>
    %245 = arith.mulf %244, %234 : vector<8x8xf32>
    %246 = arith.addf %227, %245 : vector<8x8xf32>
    %c111 = arith.constant 111 : index
    %247 = memref.load %arg1[%c111] : memref<144xf32, #tpu.memory_space<smem>>
    %248 = vector.broadcast %247 : f32 to vector<8x8xf32>
    %249 = arith.mulf %248, %234 : vector<8x8xf32>
    %250 = arith.addf %231, %249 : vector<8x8xf32>
    %c0_50 = arith.constant 0 : index
    %c9_51 = arith.constant 9 : index
    %c0_52 = arith.constant 0 : index
    %c0_53 = arith.constant 0 : index
    %251 = vector.load %arg2[%c0_50, %c9_51, %c0_52, %c0_53] : memref<1x16x9x9xbf16, #tpu.memory_space<vmem>>, vector<1x1x8x8xbf16>
    %252 = vector.shape_cast %251 : vector<1x1x8x8xbf16> to vector<8x8xbf16>
    %253 = arith.extf %252 : vector<8x8xbf16> to vector<8x8xf32>
    %c12 = arith.constant 12 : index
    %254 = memref.load %arg1[%c12] : memref<144xf32, #tpu.memory_space<smem>>
    %255 = vector.broadcast %254 : f32 to vector<8x8xf32>
    %256 = arith.mulf %255, %253 : vector<8x8xf32>
    %257 = arith.addf %238, %256 : vector<8x8xf32>
    %c48 = arith.constant 48 : index
    %258 = memref.load %arg1[%c48] : memref<144xf32, #tpu.memory_space<smem>>
    %259 = vector.broadcast %258 : f32 to vector<8x8xf32>
    %260 = arith.mulf %259, %253 : vector<8x8xf32>
    %261 = arith.addf %242, %260 : vector<8x8xf32>
    %c84 = arith.constant 84 : index
    %262 = memref.load %arg1[%c84] : memref<144xf32, #tpu.memory_space<smem>>
    %263 = vector.broadcast %262 : f32 to vector<8x8xf32>
    %264 = arith.mulf %263, %253 : vector<8x8xf32>
    %265 = arith.addf %246, %264 : vector<8x8xf32>
    %c120 = arith.constant 120 : index
    %266 = memref.load %arg1[%c120] : memref<144xf32, #tpu.memory_space<smem>>
    %267 = vector.broadcast %266 : f32 to vector<8x8xf32>
    %268 = arith.mulf %267, %253 : vector<8x8xf32>
    %269 = arith.addf %250, %268 : vector<8x8xf32>
    %c0_54 = arith.constant 0 : index
    %c10_55 = arith.constant 10 : index
    %c0_56 = arith.constant 0 : index
    %c0_57 = arith.constant 0 : index
    %270 = vector.load %arg2[%c0_54, %c10_55, %c0_56, %c0_57] : memref<1x16x9x9xbf16, #tpu.memory_space<vmem>>, vector<1x1x8x8xbf16>
    %271 = vector.shape_cast %270 : vector<1x1x8x8xbf16> to vector<8x8xbf16>
    %272 = arith.extf %271 : vector<8x8xbf16> to vector<8x8xf32>
    %c21 = arith.constant 21 : index
    %273 = memref.load %arg1[%c21] : memref<144xf32, #tpu.memory_space<smem>>
    %274 = vector.broadcast %273 : f32 to vector<8x8xf32>
    %275 = arith.mulf %274, %272 : vector<8x8xf32>
    %276 = arith.addf %257, %275 : vector<8x8xf32>
    %c57 = arith.constant 57 : index
    %277 = memref.load %arg1[%c57] : memref<144xf32, #tpu.memory_space<smem>>
    %278 = vector.broadcast %277 : f32 to vector<8x8xf32>
    %279 = arith.mulf %278, %272 : vector<8x8xf32>
    %280 = arith.addf %261, %279 : vector<8x8xf32>
    %c93 = arith.constant 93 : index
    %281 = memref.load %arg1[%c93] : memref<144xf32, #tpu.memory_space<smem>>
    %282 = vector.broadcast %281 : f32 to vector<8x8xf32>
    %283 = arith.mulf %282, %272 : vector<8x8xf32>
    %284 = arith.addf %265, %283 : vector<8x8xf32>
    %c129 = arith.constant 129 : index
    %285 = memref.load %arg1[%c129] : memref<144xf32, #tpu.memory_space<smem>>
    %286 = vector.broadcast %285 : f32 to vector<8x8xf32>
    %287 = arith.mulf %286, %272 : vector<8x8xf32>
    %288 = arith.addf %269, %287 : vector<8x8xf32>
    %c0_58 = arith.constant 0 : index
    %c11_59 = arith.constant 11 : index
    %c0_60 = arith.constant 0 : index
    %c0_61 = arith.constant 0 : index
    %289 = vector.load %arg2[%c0_58, %c11_59, %c0_60, %c0_61] : memref<1x16x9x9xbf16, #tpu.memory_space<vmem>>, vector<1x1x8x8xbf16>
    %290 = vector.shape_cast %289 : vector<1x1x8x8xbf16> to vector<8x8xbf16>
    %291 = arith.extf %290 : vector<8x8xbf16> to vector<8x8xf32>
    %c30 = arith.constant 30 : index
    %292 = memref.load %arg1[%c30] : memref<144xf32, #tpu.memory_space<smem>>
    %293 = vector.broadcast %292 : f32 to vector<8x8xf32>
    %294 = arith.mulf %293, %291 : vector<8x8xf32>
    %295 = arith.addf %276, %294 : vector<8x8xf32>
    %c66 = arith.constant 66 : index
    %296 = memref.load %arg1[%c66] : memref<144xf32, #tpu.memory_space<smem>>
    %297 = vector.broadcast %296 : f32 to vector<8x8xf32>
    %298 = arith.mulf %297, %291 : vector<8x8xf32>
    %299 = arith.addf %280, %298 : vector<8x8xf32>
    %c102 = arith.constant 102 : index
    %300 = memref.load %arg1[%c102] : memref<144xf32, #tpu.memory_space<smem>>
    %301 = vector.broadcast %300 : f32 to vector<8x8xf32>
    %302 = arith.mulf %301, %291 : vector<8x8xf32>
    %303 = arith.addf %284, %302 : vector<8x8xf32>
    %c138 = arith.constant 138 : index
    %304 = memref.load %arg1[%c138] : memref<144xf32, #tpu.memory_space<smem>>
    %305 = vector.broadcast %304 : f32 to vector<8x8xf32>
    %306 = arith.mulf %305, %291 : vector<8x8xf32>
    %307 = arith.addf %288, %306 : vector<8x8xf32>
    %c0_62 = arith.constant 0 : index
    %c12_63 = arith.constant 12 : index
    %c0_64 = arith.constant 0 : index
    %c0_65 = arith.constant 0 : index
    %308 = vector.load %arg2[%c0_62, %c12_63, %c0_64, %c0_65] : memref<1x16x9x9xbf16, #tpu.memory_space<vmem>>, vector<1x1x8x8xbf16>
    %309 = vector.shape_cast %308 : vector<1x1x8x8xbf16> to vector<8x8xbf16>
    %310 = arith.extf %309 : vector<8x8xbf16> to vector<8x8xf32>
    %c4_66 = arith.constant 4 : index
    %311 = memref.load %arg1[%c4_66] : memref<144xf32, #tpu.memory_space<smem>>
    %312 = vector.broadcast %311 : f32 to vector<8x8xf32>
    %313 = arith.mulf %312, %310 : vector<8x8xf32>
    %314 = arith.addf %295, %313 : vector<8x8xf32>
    %c40 = arith.constant 40 : index
    %315 = memref.load %arg1[%c40] : memref<144xf32, #tpu.memory_space<smem>>
    %316 = vector.broadcast %315 : f32 to vector<8x8xf32>
    %317 = arith.mulf %316, %310 : vector<8x8xf32>
    %318 = arith.addf %299, %317 : vector<8x8xf32>
    %c76 = arith.constant 76 : index
    %319 = memref.load %arg1[%c76] : memref<144xf32, #tpu.memory_space<smem>>
    %320 = vector.broadcast %319 : f32 to vector<8x8xf32>
    %321 = arith.mulf %320, %310 : vector<8x8xf32>
    %322 = arith.addf %303, %321 : vector<8x8xf32>
    %c112 = arith.constant 112 : index
    %323 = memref.load %arg1[%c112] : memref<144xf32, #tpu.memory_space<smem>>
    %324 = vector.broadcast %323 : f32 to vector<8x8xf32>
    %325 = arith.mulf %324, %310 : vector<8x8xf32>
    %326 = arith.addf %307, %325 : vector<8x8xf32>
    %c0_67 = arith.constant 0 : index
    %c13 = arith.constant 13 : index
    %c0_68 = arith.constant 0 : index
    %c0_69 = arith.constant 0 : index
    %327 = vector.load %arg2[%c0_67, %c13, %c0_68, %c0_69] : memref<1x16x9x9xbf16, #tpu.memory_space<vmem>>, vector<1x1x8x8xbf16>
    %328 = vector.shape_cast %327 : vector<1x1x8x8xbf16> to vector<8x8xbf16>
    %329 = arith.extf %328 : vector<8x8xbf16> to vector<8x8xf32>
    %c13_70 = arith.constant 13 : index
    %330 = memref.load %arg1[%c13_70] : memref<144xf32, #tpu.memory_space<smem>>
    %331 = vector.broadcast %330 : f32 to vector<8x8xf32>
    %332 = arith.mulf %331, %329 : vector<8x8xf32>
    %333 = arith.addf %314, %332 : vector<8x8xf32>
    %c49 = arith.constant 49 : index
    %334 = memref.load %arg1[%c49] : memref<144xf32, #tpu.memory_space<smem>>
    %335 = vector.broadcast %334 : f32 to vector<8x8xf32>
    %336 = arith.mulf %335, %329 : vector<8x8xf32>
    %337 = arith.addf %318, %336 : vector<8x8xf32>
    %c85 = arith.constant 85 : index
    %338 = memref.load %arg1[%c85] : memref<144xf32, #tpu.memory_space<smem>>
    %339 = vector.broadcast %338 : f32 to vector<8x8xf32>
    %340 = arith.mulf %339, %329 : vector<8x8xf32>
    %341 = arith.addf %322, %340 : vector<8x8xf32>
    %c121 = arith.constant 121 : index
    %342 = memref.load %arg1[%c121] : memref<144xf32, #tpu.memory_space<smem>>
    %343 = vector.broadcast %342 : f32 to vector<8x8xf32>
    %344 = arith.mulf %343, %329 : vector<8x8xf32>
    %345 = arith.addf %326, %344 : vector<8x8xf32>
    %c0_71 = arith.constant 0 : index
    %c14 = arith.constant 14 : index
    %c0_72 = arith.constant 0 : index
    %c0_73 = arith.constant 0 : index
    %346 = vector.load %arg2[%c0_71, %c14, %c0_72, %c0_73] : memref<1x16x9x9xbf16, #tpu.memory_space<vmem>>, vector<1x1x8x8xbf16>
    %347 = vector.shape_cast %346 : vector<1x1x8x8xbf16> to vector<8x8xbf16>
    %348 = arith.extf %347 : vector<8x8xbf16> to vector<8x8xf32>
    %c22 = arith.constant 22 : index
    %349 = memref.load %arg1[%c22] : memref<144xf32, #tpu.memory_space<smem>>
    %350 = vector.broadcast %349 : f32 to vector<8x8xf32>
    %351 = arith.mulf %350, %348 : vector<8x8xf32>
    %352 = arith.addf %333, %351 : vector<8x8xf32>
    %c58 = arith.constant 58 : index
    %353 = memref.load %arg1[%c58] : memref<144xf32, #tpu.memory_space<smem>>
    %354 = vector.broadcast %353 : f32 to vector<8x8xf32>
    %355 = arith.mulf %354, %348 : vector<8x8xf32>
    %356 = arith.addf %337, %355 : vector<8x8xf32>
    %c94 = arith.constant 94 : index
    %357 = memref.load %arg1[%c94] : memref<144xf32, #tpu.memory_space<smem>>
    %358 = vector.broadcast %357 : f32 to vector<8x8xf32>
    %359 = arith.mulf %358, %348 : vector<8x8xf32>
    %360 = arith.addf %341, %359 : vector<8x8xf32>
    %c130 = arith.constant 130 : index
    %361 = memref.load %arg1[%c130] : memref<144xf32, #tpu.memory_space<smem>>
    %362 = vector.broadcast %361 : f32 to vector<8x8xf32>
    %363 = arith.mulf %362, %348 : vector<8x8xf32>
    %364 = arith.addf %345, %363 : vector<8x8xf32>
    %c0_74 = arith.constant 0 : index
    %c15 = arith.constant 15 : index
    %c0_75 = arith.constant 0 : index
    %c0_76 = arith.constant 0 : index
    %365 = vector.load %arg2[%c0_74, %c15, %c0_75, %c0_76] : memref<1x16x9x9xbf16, #tpu.memory_space<vmem>>, vector<1x1x8x8xbf16>
    %366 = vector.shape_cast %365 : vector<1x1x8x8xbf16> to vector<8x8xbf16>
    %367 = arith.extf %366 : vector<8x8xbf16> to vector<8x8xf32>
    %c31 = arith.constant 31 : index
    %368 = memref.load %arg1[%c31] : memref<144xf32, #tpu.memory_space<smem>>
    %369 = vector.broadcast %368 : f32 to vector<8x8xf32>
    %370 = arith.mulf %369, %367 : vector<8x8xf32>
    %371 = arith.addf %352, %370 : vector<8x8xf32>
    %c67 = arith.constant 67 : index
    %372 = memref.load %arg1[%c67] : memref<144xf32, #tpu.memory_space<smem>>
    %373 = vector.broadcast %372 : f32 to vector<8x8xf32>
    %374 = arith.mulf %373, %367 : vector<8x8xf32>
    %375 = arith.addf %356, %374 : vector<8x8xf32>
    %c103 = arith.constant 103 : index
    %376 = memref.load %arg1[%c103] : memref<144xf32, #tpu.memory_space<smem>>
    %377 = vector.broadcast %376 : f32 to vector<8x8xf32>
    %378 = arith.mulf %377, %367 : vector<8x8xf32>
    %379 = arith.addf %360, %378 : vector<8x8xf32>
    %c139 = arith.constant 139 : index
    %380 = memref.load %arg1[%c139] : memref<144xf32, #tpu.memory_space<smem>>
    %381 = vector.broadcast %380 : f32 to vector<8x8xf32>
    %382 = arith.mulf %381, %367 : vector<8x8xf32>
    %383 = arith.addf %364, %382 : vector<8x8xf32>
    %c0_77 = arith.constant 0 : index
    %c8_78 = arith.constant 8 : index
    %c0_79 = arith.constant 0 : index
    %c1_80 = arith.constant 1 : index
    %384 = vector.load %arg2[%c0_77, %c8_78, %c0_79, %c1_80] : memref<1x16x9x9xbf16, #tpu.memory_space<vmem>>, vector<1x1x8x8xbf16>
    %385 = vector.shape_cast %384 : vector<1x1x8x8xbf16> to vector<8x8xbf16>
    %386 = arith.extf %385 : vector<8x8xbf16> to vector<8x8xf32>
    %c5_81 = arith.constant 5 : index
    %387 = memref.load %arg1[%c5_81] : memref<144xf32, #tpu.memory_space<smem>>
    %388 = vector.broadcast %387 : f32 to vector<8x8xf32>
    %389 = arith.mulf %388, %386 : vector<8x8xf32>
    %390 = arith.addf %371, %389 : vector<8x8xf32>
    %c41 = arith.constant 41 : index
    %391 = memref.load %arg1[%c41] : memref<144xf32, #tpu.memory_space<smem>>
    %392 = vector.broadcast %391 : f32 to vector<8x8xf32>
    %393 = arith.mulf %392, %386 : vector<8x8xf32>
    %394 = arith.addf %375, %393 : vector<8x8xf32>
    %c77 = arith.constant 77 : index
    %395 = memref.load %arg1[%c77] : memref<144xf32, #tpu.memory_space<smem>>
    %396 = vector.broadcast %395 : f32 to vector<8x8xf32>
    %397 = arith.mulf %396, %386 : vector<8x8xf32>
    %398 = arith.addf %379, %397 : vector<8x8xf32>
    %c113 = arith.constant 113 : index
    %399 = memref.load %arg1[%c113] : memref<144xf32, #tpu.memory_space<smem>>
    %400 = vector.broadcast %399 : f32 to vector<8x8xf32>
    %401 = arith.mulf %400, %386 : vector<8x8xf32>
    %402 = arith.addf %383, %401 : vector<8x8xf32>
    %c0_82 = arith.constant 0 : index
    %c9_83 = arith.constant 9 : index
    %c0_84 = arith.constant 0 : index
    %c1_85 = arith.constant 1 : index
    %403 = vector.load %arg2[%c0_82, %c9_83, %c0_84, %c1_85] : memref<1x16x9x9xbf16, #tpu.memory_space<vmem>>, vector<1x1x8x8xbf16>
    %404 = vector.shape_cast %403 : vector<1x1x8x8xbf16> to vector<8x8xbf16>
    %405 = arith.extf %404 : vector<8x8xbf16> to vector<8x8xf32>
    %c14_86 = arith.constant 14 : index
    %406 = memref.load %arg1[%c14_86] : memref<144xf32, #tpu.memory_space<smem>>
    %407 = vector.broadcast %406 : f32 to vector<8x8xf32>
    %408 = arith.mulf %407, %405 : vector<8x8xf32>
    %409 = arith.addf %390, %408 : vector<8x8xf32>
    %c50 = arith.constant 50 : index
    %410 = memref.load %arg1[%c50] : memref<144xf32, #tpu.memory_space<smem>>
    %411 = vector.broadcast %410 : f32 to vector<8x8xf32>
    %412 = arith.mulf %411, %405 : vector<8x8xf32>
    %413 = arith.addf %394, %412 : vector<8x8xf32>
    %c86 = arith.constant 86 : index
    %414 = memref.load %arg1[%c86] : memref<144xf32, #tpu.memory_space<smem>>
    %415 = vector.broadcast %414 : f32 to vector<8x8xf32>
    %416 = arith.mulf %415, %405 : vector<8x8xf32>
    %417 = arith.addf %398, %416 : vector<8x8xf32>
    %c122 = arith.constant 122 : index
    %418 = memref.load %arg1[%c122] : memref<144xf32, #tpu.memory_space<smem>>
    %419 = vector.broadcast %418 : f32 to vector<8x8xf32>
    %420 = arith.mulf %419, %405 : vector<8x8xf32>
    %421 = arith.addf %402, %420 : vector<8x8xf32>
    %c0_87 = arith.constant 0 : index
    %c10_88 = arith.constant 10 : index
    %c0_89 = arith.constant 0 : index
    %c1_90 = arith.constant 1 : index
    %422 = vector.load %arg2[%c0_87, %c10_88, %c0_89, %c1_90] : memref<1x16x9x9xbf16, #tpu.memory_space<vmem>>, vector<1x1x8x8xbf16>
    %423 = vector.shape_cast %422 : vector<1x1x8x8xbf16> to vector<8x8xbf16>
    %424 = arith.extf %423 : vector<8x8xbf16> to vector<8x8xf32>
    %c23 = arith.constant 23 : index
    %425 = memref.load %arg1[%c23] : memref<144xf32, #tpu.memory_space<smem>>
    %426 = vector.broadcast %425 : f32 to vector<8x8xf32>
    %427 = arith.mulf %426, %424 : vector<8x8xf32>
    %428 = arith.addf %409, %427 : vector<8x8xf32>
    %c59 = arith.constant 59 : index
    %429 = memref.load %arg1[%c59] : memref<144xf32, #tpu.memory_space<smem>>
    %430 = vector.broadcast %429 : f32 to vector<8x8xf32>
    %431 = arith.mulf %430, %424 : vector<8x8xf32>
    %432 = arith.addf %413, %431 : vector<8x8xf32>
    %c95 = arith.constant 95 : index
    %433 = memref.load %arg1[%c95] : memref<144xf32, #tpu.memory_space<smem>>
    %434 = vector.broadcast %433 : f32 to vector<8x8xf32>
    %435 = arith.mulf %434, %424 : vector<8x8xf32>
    %436 = arith.addf %417, %435 : vector<8x8xf32>
    %c131 = arith.constant 131 : index
    %437 = memref.load %arg1[%c131] : memref<144xf32, #tpu.memory_space<smem>>
    %438 = vector.broadcast %437 : f32 to vector<8x8xf32>
    %439 = arith.mulf %438, %424 : vector<8x8xf32>
    %440 = arith.addf %421, %439 : vector<8x8xf32>
    %c0_91 = arith.constant 0 : index
    %c11_92 = arith.constant 11 : index
    %c0_93 = arith.constant 0 : index
    %c1_94 = arith.constant 1 : index
    %441 = vector.load %arg2[%c0_91, %c11_92, %c0_93, %c1_94] : memref<1x16x9x9xbf16, #tpu.memory_space<vmem>>, vector<1x1x8x8xbf16>
    %442 = vector.shape_cast %441 : vector<1x1x8x8xbf16> to vector<8x8xbf16>
    %443 = arith.extf %442 : vector<8x8xbf16> to vector<8x8xf32>
    %c32 = arith.constant 32 : index
    %444 = memref.load %arg1[%c32] : memref<144xf32, #tpu.memory_space<smem>>
    %445 = vector.broadcast %444 : f32 to vector<8x8xf32>
    %446 = arith.mulf %445, %443 : vector<8x8xf32>
    %447 = arith.addf %428, %446 : vector<8x8xf32>
    %c68 = arith.constant 68 : index
    %448 = memref.load %arg1[%c68] : memref<144xf32, #tpu.memory_space<smem>>
    %449 = vector.broadcast %448 : f32 to vector<8x8xf32>
    %450 = arith.mulf %449, %443 : vector<8x8xf32>
    %451 = arith.addf %432, %450 : vector<8x8xf32>
    %c104 = arith.constant 104 : index
    %452 = memref.load %arg1[%c104] : memref<144xf32, #tpu.memory_space<smem>>
    %453 = vector.broadcast %452 : f32 to vector<8x8xf32>
    %454 = arith.mulf %453, %443 : vector<8x8xf32>
    %455 = arith.addf %436, %454 : vector<8x8xf32>
    %c140 = arith.constant 140 : index
    %456 = memref.load %arg1[%c140] : memref<144xf32, #tpu.memory_space<smem>>
    %457 = vector.broadcast %456 : f32 to vector<8x8xf32>
    %458 = arith.mulf %457, %443 : vector<8x8xf32>
    %459 = arith.addf %440, %458 : vector<8x8xf32>
    %c0_95 = arith.constant 0 : index
    %c0_96 = arith.constant 0 : index
    %c1_97 = arith.constant 1 : index
    %c0_98 = arith.constant 0 : index
    %460 = vector.load %arg2[%c0_95, %c0_96, %c1_97, %c0_98] : memref<1x16x9x9xbf16, #tpu.memory_space<vmem>>, vector<1x1x8x8xbf16>
    %461 = vector.shape_cast %460 : vector<1x1x8x8xbf16> to vector<8x8xbf16>
    %462 = arith.extf %461 : vector<8x8xbf16> to vector<8x8xf32>
    %c6_99 = arith.constant 6 : index
    %463 = memref.load %arg1[%c6_99] : memref<144xf32, #tpu.memory_space<smem>>
    %464 = vector.broadcast %463 : f32 to vector<8x8xf32>
    %465 = arith.mulf %464, %462 : vector<8x8xf32>
    %466 = arith.addf %447, %465 : vector<8x8xf32>
    %c42 = arith.constant 42 : index
    %467 = memref.load %arg1[%c42] : memref<144xf32, #tpu.memory_space<smem>>
    %468 = vector.broadcast %467 : f32 to vector<8x8xf32>
    %469 = arith.mulf %468, %462 : vector<8x8xf32>
    %470 = arith.addf %451, %469 : vector<8x8xf32>
    %c78 = arith.constant 78 : index
    %471 = memref.load %arg1[%c78] : memref<144xf32, #tpu.memory_space<smem>>
    %472 = vector.broadcast %471 : f32 to vector<8x8xf32>
    %473 = arith.mulf %472, %462 : vector<8x8xf32>
    %474 = arith.addf %455, %473 : vector<8x8xf32>
    %c114 = arith.constant 114 : index
    %475 = memref.load %arg1[%c114] : memref<144xf32, #tpu.memory_space<smem>>
    %476 = vector.broadcast %475 : f32 to vector<8x8xf32>
    %477 = arith.mulf %476, %462 : vector<8x8xf32>
    %478 = arith.addf %459, %477 : vector<8x8xf32>
    %c0_100 = arith.constant 0 : index
    %c1_101 = arith.constant 1 : index
    %c1_102 = arith.constant 1 : index
    %c0_103 = arith.constant 0 : index
    %479 = vector.load %arg2[%c0_100, %c1_101, %c1_102, %c0_103] : memref<1x16x9x9xbf16, #tpu.memory_space<vmem>>, vector<1x1x8x8xbf16>
    %480 = vector.shape_cast %479 : vector<1x1x8x8xbf16> to vector<8x8xbf16>
    %481 = arith.extf %480 : vector<8x8xbf16> to vector<8x8xf32>
    %c15_104 = arith.constant 15 : index
    %482 = memref.load %arg1[%c15_104] : memref<144xf32, #tpu.memory_space<smem>>
    %483 = vector.broadcast %482 : f32 to vector<8x8xf32>
    %484 = arith.mulf %483, %481 : vector<8x8xf32>
    %485 = arith.addf %466, %484 : vector<8x8xf32>
    %c51 = arith.constant 51 : index
    %486 = memref.load %arg1[%c51] : memref<144xf32, #tpu.memory_space<smem>>
    %487 = vector.broadcast %486 : f32 to vector<8x8xf32>
    %488 = arith.mulf %487, %481 : vector<8x8xf32>
    %489 = arith.addf %470, %488 : vector<8x8xf32>
    %c87 = arith.constant 87 : index
    %490 = memref.load %arg1[%c87] : memref<144xf32, #tpu.memory_space<smem>>
    %491 = vector.broadcast %490 : f32 to vector<8x8xf32>
    %492 = arith.mulf %491, %481 : vector<8x8xf32>
    %493 = arith.addf %474, %492 : vector<8x8xf32>
    %c123 = arith.constant 123 : index
    %494 = memref.load %arg1[%c123] : memref<144xf32, #tpu.memory_space<smem>>
    %495 = vector.broadcast %494 : f32 to vector<8x8xf32>
    %496 = arith.mulf %495, %481 : vector<8x8xf32>
    %497 = arith.addf %478, %496 : vector<8x8xf32>
    %c0_105 = arith.constant 0 : index
    %c2_106 = arith.constant 2 : index
    %c1_107 = arith.constant 1 : index
    %c0_108 = arith.constant 0 : index
    %498 = vector.load %arg2[%c0_105, %c2_106, %c1_107, %c0_108] : memref<1x16x9x9xbf16, #tpu.memory_space<vmem>>, vector<1x1x8x8xbf16>
    %499 = vector.shape_cast %498 : vector<1x1x8x8xbf16> to vector<8x8xbf16>
    %500 = arith.extf %499 : vector<8x8xbf16> to vector<8x8xf32>
    %c24 = arith.constant 24 : index
    %501 = memref.load %arg1[%c24] : memref<144xf32, #tpu.memory_space<smem>>
    %502 = vector.broadcast %501 : f32 to vector<8x8xf32>
    %503 = arith.mulf %502, %500 : vector<8x8xf32>
    %504 = arith.addf %485, %503 : vector<8x8xf32>
    %c60 = arith.constant 60 : index
    %505 = memref.load %arg1[%c60] : memref<144xf32, #tpu.memory_space<smem>>
    %506 = vector.broadcast %505 : f32 to vector<8x8xf32>
    %507 = arith.mulf %506, %500 : vector<8x8xf32>
    %508 = arith.addf %489, %507 : vector<8x8xf32>
    %c96 = arith.constant 96 : index
    %509 = memref.load %arg1[%c96] : memref<144xf32, #tpu.memory_space<smem>>
    %510 = vector.broadcast %509 : f32 to vector<8x8xf32>
    %511 = arith.mulf %510, %500 : vector<8x8xf32>
    %512 = arith.addf %493, %511 : vector<8x8xf32>
    %c132 = arith.constant 132 : index
    %513 = memref.load %arg1[%c132] : memref<144xf32, #tpu.memory_space<smem>>
    %514 = vector.broadcast %513 : f32 to vector<8x8xf32>
    %515 = arith.mulf %514, %500 : vector<8x8xf32>
    %516 = arith.addf %497, %515 : vector<8x8xf32>
    %c0_109 = arith.constant 0 : index
    %c3_110 = arith.constant 3 : index
    %c1_111 = arith.constant 1 : index
    %c0_112 = arith.constant 0 : index
    %517 = vector.load %arg2[%c0_109, %c3_110, %c1_111, %c0_112] : memref<1x16x9x9xbf16, #tpu.memory_space<vmem>>, vector<1x1x8x8xbf16>
    %518 = vector.shape_cast %517 : vector<1x1x8x8xbf16> to vector<8x8xbf16>
    %519 = arith.extf %518 : vector<8x8xbf16> to vector<8x8xf32>
    %c33 = arith.constant 33 : index
    %520 = memref.load %arg1[%c33] : memref<144xf32, #tpu.memory_space<smem>>
    %521 = vector.broadcast %520 : f32 to vector<8x8xf32>
    %522 = arith.mulf %521, %519 : vector<8x8xf32>
    %523 = arith.addf %504, %522 : vector<8x8xf32>
    %c69 = arith.constant 69 : index
    %524 = memref.load %arg1[%c69] : memref<144xf32, #tpu.memory_space<smem>>
    %525 = vector.broadcast %524 : f32 to vector<8x8xf32>
    %526 = arith.mulf %525, %519 : vector<8x8xf32>
    %527 = arith.addf %508, %526 : vector<8x8xf32>
    %c105 = arith.constant 105 : index
    %528 = memref.load %arg1[%c105] : memref<144xf32, #tpu.memory_space<smem>>
    %529 = vector.broadcast %528 : f32 to vector<8x8xf32>
    %530 = arith.mulf %529, %519 : vector<8x8xf32>
    %531 = arith.addf %512, %530 : vector<8x8xf32>
    %c141 = arith.constant 141 : index
    %532 = memref.load %arg1[%c141] : memref<144xf32, #tpu.memory_space<smem>>
    %533 = vector.broadcast %532 : f32 to vector<8x8xf32>
    %534 = arith.mulf %533, %519 : vector<8x8xf32>
    %535 = arith.addf %516, %534 : vector<8x8xf32>
    %c0_113 = arith.constant 0 : index
    %c4_114 = arith.constant 4 : index
    %c1_115 = arith.constant 1 : index
    %c0_116 = arith.constant 0 : index
    %536 = vector.load %arg2[%c0_113, %c4_114, %c1_115, %c0_116] : memref<1x16x9x9xbf16, #tpu.memory_space<vmem>>, vector<1x1x8x8xbf16>
    %537 = vector.shape_cast %536 : vector<1x1x8x8xbf16> to vector<8x8xbf16>
    %538 = arith.extf %537 : vector<8x8xbf16> to vector<8x8xf32>
    %c7_117 = arith.constant 7 : index
    %539 = memref.load %arg1[%c7_117] : memref<144xf32, #tpu.memory_space<smem>>
    %540 = vector.broadcast %539 : f32 to vector<8x8xf32>
    %541 = arith.mulf %540, %538 : vector<8x8xf32>
    %542 = arith.addf %523, %541 : vector<8x8xf32>
    %c43 = arith.constant 43 : index
    %543 = memref.load %arg1[%c43] : memref<144xf32, #tpu.memory_space<smem>>
    %544 = vector.broadcast %543 : f32 to vector<8x8xf32>
    %545 = arith.mulf %544, %538 : vector<8x8xf32>
    %546 = arith.addf %527, %545 : vector<8x8xf32>
    %c79 = arith.constant 79 : index
    %547 = memref.load %arg1[%c79] : memref<144xf32, #tpu.memory_space<smem>>
    %548 = vector.broadcast %547 : f32 to vector<8x8xf32>
    %549 = arith.mulf %548, %538 : vector<8x8xf32>
    %550 = arith.addf %531, %549 : vector<8x8xf32>
    %c115 = arith.constant 115 : index
    %551 = memref.load %arg1[%c115] : memref<144xf32, #tpu.memory_space<smem>>
    %552 = vector.broadcast %551 : f32 to vector<8x8xf32>
    %553 = arith.mulf %552, %538 : vector<8x8xf32>
    %554 = arith.addf %535, %553 : vector<8x8xf32>
    %c0_118 = arith.constant 0 : index
    %c5_119 = arith.constant 5 : index
    %c1_120 = arith.constant 1 : index
    %c0_121 = arith.constant 0 : index
    %555 = vector.load %arg2[%c0_118, %c5_119, %c1_120, %c0_121] : memref<1x16x9x9xbf16, #tpu.memory_space<vmem>>, vector<1x1x8x8xbf16>
    %556 = vector.shape_cast %555 : vector<1x1x8x8xbf16> to vector<8x8xbf16>
    %557 = arith.extf %556 : vector<8x8xbf16> to vector<8x8xf32>
    %c16 = arith.constant 16 : index
    %558 = memref.load %arg1[%c16] : memref<144xf32, #tpu.memory_space<smem>>
    %559 = vector.broadcast %558 : f32 to vector<8x8xf32>
    %560 = arith.mulf %559, %557 : vector<8x8xf32>
    %561 = arith.addf %542, %560 : vector<8x8xf32>
    %c52 = arith.constant 52 : index
    %562 = memref.load %arg1[%c52] : memref<144xf32, #tpu.memory_space<smem>>
    %563 = vector.broadcast %562 : f32 to vector<8x8xf32>
    %564 = arith.mulf %563, %557 : vector<8x8xf32>
    %565 = arith.addf %546, %564 : vector<8x8xf32>
    %c88 = arith.constant 88 : index
    %566 = memref.load %arg1[%c88] : memref<144xf32, #tpu.memory_space<smem>>
    %567 = vector.broadcast %566 : f32 to vector<8x8xf32>
    %568 = arith.mulf %567, %557 : vector<8x8xf32>
    %569 = arith.addf %550, %568 : vector<8x8xf32>
    %c124 = arith.constant 124 : index
    %570 = memref.load %arg1[%c124] : memref<144xf32, #tpu.memory_space<smem>>
    %571 = vector.broadcast %570 : f32 to vector<8x8xf32>
    %572 = arith.mulf %571, %557 : vector<8x8xf32>
    %573 = arith.addf %554, %572 : vector<8x8xf32>
    %c0_122 = arith.constant 0 : index
    %c6_123 = arith.constant 6 : index
    %c1_124 = arith.constant 1 : index
    %c0_125 = arith.constant 0 : index
    %574 = vector.load %arg2[%c0_122, %c6_123, %c1_124, %c0_125] : memref<1x16x9x9xbf16, #tpu.memory_space<vmem>>, vector<1x1x8x8xbf16>
    %575 = vector.shape_cast %574 : vector<1x1x8x8xbf16> to vector<8x8xbf16>
    %576 = arith.extf %575 : vector<8x8xbf16> to vector<8x8xf32>
    %c25 = arith.constant 25 : index
    %577 = memref.load %arg1[%c25] : memref<144xf32, #tpu.memory_space<smem>>
    %578 = vector.broadcast %577 : f32 to vector<8x8xf32>
    %579 = arith.mulf %578, %576 : vector<8x8xf32>
    %580 = arith.addf %561, %579 : vector<8x8xf32>
    %c61 = arith.constant 61 : index
    %581 = memref.load %arg1[%c61] : memref<144xf32, #tpu.memory_space<smem>>
    %582 = vector.broadcast %581 : f32 to vector<8x8xf32>
    %583 = arith.mulf %582, %576 : vector<8x8xf32>
    %584 = arith.addf %565, %583 : vector<8x8xf32>
    %c97 = arith.constant 97 : index
    %585 = memref.load %arg1[%c97] : memref<144xf32, #tpu.memory_space<smem>>
    %586 = vector.broadcast %585 : f32 to vector<8x8xf32>
    %587 = arith.mulf %586, %576 : vector<8x8xf32>
    %588 = arith.addf %569, %587 : vector<8x8xf32>
    %c133 = arith.constant 133 : index
    %589 = memref.load %arg1[%c133] : memref<144xf32, #tpu.memory_space<smem>>
    %590 = vector.broadcast %589 : f32 to vector<8x8xf32>
    %591 = arith.mulf %590, %576 : vector<8x8xf32>
    %592 = arith.addf %573, %591 : vector<8x8xf32>
    %c0_126 = arith.constant 0 : index
    %c7_127 = arith.constant 7 : index
    %c1_128 = arith.constant 1 : index
    %c0_129 = arith.constant 0 : index
    %593 = vector.load %arg2[%c0_126, %c7_127, %c1_128, %c0_129] : memref<1x16x9x9xbf16, #tpu.memory_space<vmem>>, vector<1x1x8x8xbf16>
    %594 = vector.shape_cast %593 : vector<1x1x8x8xbf16> to vector<8x8xbf16>
    %595 = arith.extf %594 : vector<8x8xbf16> to vector<8x8xf32>
    %c34 = arith.constant 34 : index
    %596 = memref.load %arg1[%c34] : memref<144xf32, #tpu.memory_space<smem>>
    %597 = vector.broadcast %596 : f32 to vector<8x8xf32>
    %598 = arith.mulf %597, %595 : vector<8x8xf32>
    %599 = arith.addf %580, %598 : vector<8x8xf32>
    %c70 = arith.constant 70 : index
    %600 = memref.load %arg1[%c70] : memref<144xf32, #tpu.memory_space<smem>>
    %601 = vector.broadcast %600 : f32 to vector<8x8xf32>
    %602 = arith.mulf %601, %595 : vector<8x8xf32>
    %603 = arith.addf %584, %602 : vector<8x8xf32>
    %c106 = arith.constant 106 : index
    %604 = memref.load %arg1[%c106] : memref<144xf32, #tpu.memory_space<smem>>
    %605 = vector.broadcast %604 : f32 to vector<8x8xf32>
    %606 = arith.mulf %605, %595 : vector<8x8xf32>
    %607 = arith.addf %588, %606 : vector<8x8xf32>
    %c142 = arith.constant 142 : index
    %608 = memref.load %arg1[%c142] : memref<144xf32, #tpu.memory_space<smem>>
    %609 = vector.broadcast %608 : f32 to vector<8x8xf32>
    %610 = arith.mulf %609, %595 : vector<8x8xf32>
    %611 = arith.addf %592, %610 : vector<8x8xf32>
    %c0_130 = arith.constant 0 : index
    %c0_131 = arith.constant 0 : index
    %c1_132 = arith.constant 1 : index
    %c1_133 = arith.constant 1 : index
    %612 = vector.load %arg2[%c0_130, %c0_131, %c1_132, %c1_133] : memref<1x16x9x9xbf16, #tpu.memory_space<vmem>>, vector<1x1x8x8xbf16>
    %613 = vector.shape_cast %612 : vector<1x1x8x8xbf16> to vector<8x8xbf16>
    %614 = arith.extf %613 : vector<8x8xbf16> to vector<8x8xf32>
    %c8_134 = arith.constant 8 : index
    %615 = memref.load %arg1[%c8_134] : memref<144xf32, #tpu.memory_space<smem>>
    %616 = vector.broadcast %615 : f32 to vector<8x8xf32>
    %617 = arith.mulf %616, %614 : vector<8x8xf32>
    %618 = arith.addf %599, %617 : vector<8x8xf32>
    %c44 = arith.constant 44 : index
    %619 = memref.load %arg1[%c44] : memref<144xf32, #tpu.memory_space<smem>>
    %620 = vector.broadcast %619 : f32 to vector<8x8xf32>
    %621 = arith.mulf %620, %614 : vector<8x8xf32>
    %622 = arith.addf %603, %621 : vector<8x8xf32>
    %c80 = arith.constant 80 : index
    %623 = memref.load %arg1[%c80] : memref<144xf32, #tpu.memory_space<smem>>
    %624 = vector.broadcast %623 : f32 to vector<8x8xf32>
    %625 = arith.mulf %624, %614 : vector<8x8xf32>
    %626 = arith.addf %607, %625 : vector<8x8xf32>
    %c116 = arith.constant 116 : index
    %627 = memref.load %arg1[%c116] : memref<144xf32, #tpu.memory_space<smem>>
    %628 = vector.broadcast %627 : f32 to vector<8x8xf32>
    %629 = arith.mulf %628, %614 : vector<8x8xf32>
    %630 = arith.addf %611, %629 : vector<8x8xf32>
    %c0_135 = arith.constant 0 : index
    %c1_136 = arith.constant 1 : index
    %c1_137 = arith.constant 1 : index
    %c1_138 = arith.constant 1 : index
    %631 = vector.load %arg2[%c0_135, %c1_136, %c1_137, %c1_138] : memref<1x16x9x9xbf16, #tpu.memory_space<vmem>>, vector<1x1x8x8xbf16>
    %632 = vector.shape_cast %631 : vector<1x1x8x8xbf16> to vector<8x8xbf16>
    %633 = arith.extf %632 : vector<8x8xbf16> to vector<8x8xf32>
    %c17 = arith.constant 17 : index
    %634 = memref.load %arg1[%c17] : memref<144xf32, #tpu.memory_space<smem>>
    %635 = vector.broadcast %634 : f32 to vector<8x8xf32>
    %636 = arith.mulf %635, %633 : vector<8x8xf32>
    %637 = arith.addf %618, %636 : vector<8x8xf32>
    %c53 = arith.constant 53 : index
    %638 = memref.load %arg1[%c53] : memref<144xf32, #tpu.memory_space<smem>>
    %639 = vector.broadcast %638 : f32 to vector<8x8xf32>
    %640 = arith.mulf %639, %633 : vector<8x8xf32>
    %641 = arith.addf %622, %640 : vector<8x8xf32>
    %c89 = arith.constant 89 : index
    %642 = memref.load %arg1[%c89] : memref<144xf32, #tpu.memory_space<smem>>
    %643 = vector.broadcast %642 : f32 to vector<8x8xf32>
    %644 = arith.mulf %643, %633 : vector<8x8xf32>
    %645 = arith.addf %626, %644 : vector<8x8xf32>
    %c125 = arith.constant 125 : index
    %646 = memref.load %arg1[%c125] : memref<144xf32, #tpu.memory_space<smem>>
    %647 = vector.broadcast %646 : f32 to vector<8x8xf32>
    %648 = arith.mulf %647, %633 : vector<8x8xf32>
    %649 = arith.addf %630, %648 : vector<8x8xf32>
    %c0_139 = arith.constant 0 : index
    %c2_140 = arith.constant 2 : index
    %c1_141 = arith.constant 1 : index
    %c1_142 = arith.constant 1 : index
    %650 = vector.load %arg2[%c0_139, %c2_140, %c1_141, %c1_142] : memref<1x16x9x9xbf16, #tpu.memory_space<vmem>>, vector<1x1x8x8xbf16>
    %651 = vector.shape_cast %650 : vector<1x1x8x8xbf16> to vector<8x8xbf16>
    %652 = arith.extf %651 : vector<8x8xbf16> to vector<8x8xf32>
    %c26 = arith.constant 26 : index
    %653 = memref.load %arg1[%c26] : memref<144xf32, #tpu.memory_space<smem>>
    %654 = vector.broadcast %653 : f32 to vector<8x8xf32>
    %655 = arith.mulf %654, %652 : vector<8x8xf32>
    %656 = arith.addf %637, %655 : vector<8x8xf32>
    %c62 = arith.constant 62 : index
    %657 = memref.load %arg1[%c62] : memref<144xf32, #tpu.memory_space<smem>>
    %658 = vector.broadcast %657 : f32 to vector<8x8xf32>
    %659 = arith.mulf %658, %652 : vector<8x8xf32>
    %660 = arith.addf %641, %659 : vector<8x8xf32>
    %c98 = arith.constant 98 : index
    %661 = memref.load %arg1[%c98] : memref<144xf32, #tpu.memory_space<smem>>
    %662 = vector.broadcast %661 : f32 to vector<8x8xf32>
    %663 = arith.mulf %662, %652 : vector<8x8xf32>
    %664 = arith.addf %645, %663 : vector<8x8xf32>
    %c134 = arith.constant 134 : index
    %665 = memref.load %arg1[%c134] : memref<144xf32, #tpu.memory_space<smem>>
    %666 = vector.broadcast %665 : f32 to vector<8x8xf32>
    %667 = arith.mulf %666, %652 : vector<8x8xf32>
    %668 = arith.addf %649, %667 : vector<8x8xf32>
    %c0_143 = arith.constant 0 : index
    %c3_144 = arith.constant 3 : index
    %c1_145 = arith.constant 1 : index
    %c1_146 = arith.constant 1 : index
    %669 = vector.load %arg2[%c0_143, %c3_144, %c1_145, %c1_146] : memref<1x16x9x9xbf16, #tpu.memory_space<vmem>>, vector<1x1x8x8xbf16>
    %670 = vector.shape_cast %669 : vector<1x1x8x8xbf16> to vector<8x8xbf16>
    %671 = arith.extf %670 : vector<8x8xbf16> to vector<8x8xf32>
    %c35 = arith.constant 35 : index
    %672 = memref.load %arg1[%c35] : memref<144xf32, #tpu.memory_space<smem>>
    %673 = vector.broadcast %672 : f32 to vector<8x8xf32>
    %674 = arith.mulf %673, %671 : vector<8x8xf32>
    %675 = arith.addf %656, %674 : vector<8x8xf32>
    %c71 = arith.constant 71 : index
    %676 = memref.load %arg1[%c71] : memref<144xf32, #tpu.memory_space<smem>>
    %677 = vector.broadcast %676 : f32 to vector<8x8xf32>
    %678 = arith.mulf %677, %671 : vector<8x8xf32>
    %679 = arith.addf %660, %678 : vector<8x8xf32>
    %c107 = arith.constant 107 : index
    %680 = memref.load %arg1[%c107] : memref<144xf32, #tpu.memory_space<smem>>
    %681 = vector.broadcast %680 : f32 to vector<8x8xf32>
    %682 = arith.mulf %681, %671 : vector<8x8xf32>
    %683 = arith.addf %664, %682 : vector<8x8xf32>
    %c143 = arith.constant 143 : index
    %684 = memref.load %arg1[%c143] : memref<144xf32, #tpu.memory_space<smem>>
    %685 = vector.broadcast %684 : f32 to vector<8x8xf32>
    %686 = arith.mulf %685, %671 : vector<8x8xf32>
    %687 = arith.addf %668, %686 : vector<8x8xf32>
    %cst_147 = arith.constant 0.000000e+00 : f32
    %688 = vector.broadcast %cst_147 : f32 to vector<8x8xf32>
    %689 = arith.cmpf ogt, %675, %688 : vector<8x8xf32>
    %cst_148 = arith.constant 1.000000e-01 : f32
    %690 = vector.broadcast %cst_148 : f32 to vector<8x8xf32>
    %691 = arith.mulf %690, %675 : vector<8x8xf32>
    %692 = arith.select %689, %675, %691 : vector<8x8xi1>, vector<8x8xf32>
    %c0_149 = arith.constant 0 : index
    %c0_150 = arith.constant 0 : index
    %c0_151 = arith.constant 0 : index
    %c0_152 = arith.constant 0 : index
    %693 = vector.load %arg3[%c0_149, %c0_150, %c0_151, %c0_152] : memref<1x4x8x8xf32, #tpu.memory_space<vmem>>, vector<1x1x8x8xf32>
    %694 = vector.shape_cast %693 : vector<1x1x8x8xf32> to vector<8x8xf32>
    %695 = vector.shape_cast %692 : vector<8x8xf32> to vector<1x1x8x8xf32>
    tpu.vector_store %arg3[%c0_149, %c0_150, %c0_151, %c0_152], %695 {strides = array<i32>} : memref<1x4x8x8xf32, #tpu.memory_space<vmem>>, vector<1x1x8x8xf32>,
    %cst_153 = arith.constant 0.000000e+00 : f32
    %696 = vector.broadcast %cst_153 : f32 to vector<8x8xf32>
    %697 = arith.cmpf ogt, %679, %696 : vector<8x8xf32>
    %cst_154 = arith.constant 1.000000e-01 : f32
    %698 = vector.broadcast %cst_154 : f32 to vector<8x8xf32>
    %699 = arith.mulf %698, %679 : vector<8x8xf32>
    %700 = arith.select %697, %679, %699 : vector<8x8xi1>, vector<8x8xf32>
    %c0_155 = arith.constant 0 : index
    %c1_156 = arith.constant 1 : index
    %c0_157 = arith.constant 0 : index
    %c0_158 = arith.constant 0 : index
    %701 = vector.load %arg3[%c0_155, %c1_156, %c0_157, %c0_158] : memref<1x4x8x8xf32, #tpu.memory_space<vmem>>, vector<1x1x8x8xf32>
    %702 = vector.shape_cast %701 : vector<1x1x8x8xf32> to vector<8x8xf32>
    %703 = vector.shape_cast %700 : vector<8x8xf32> to vector<1x1x8x8xf32>
    tpu.vector_store %arg3[%c0_155, %c1_156, %c0_157, %c0_158], %703 {strides = array<i32>} : memref<1x4x8x8xf32, #tpu.memory_space<vmem>>, vector<1x1x8x8xf32>,
    %cst_159 = arith.constant 0.000000e+00 : f32
    %704 = vector.broadcast %cst_159 : f32 to vector<8x8xf32>
    %705 = arith.cmpf ogt, %683, %704 : vector<8x8xf32>
    %cst_160 = arith.constant 1.000000e-01 : f32
    %706 = vector.broadcast %cst_160 : f32 to vector<8x8xf32>
    %707 = arith.mulf %706, %683 : vector<8x8xf32>
    %708 = arith.select %705, %683, %707 : vector<8x8xi1>, vector<8x8xf32>
    %c0_161 = arith.constant 0 : index
    %c2_162 = arith.constant 2 : index
    %c0_163 = arith.constant 0 : index
    %c0_164 = arith.constant 0 : index
    %709 = vector.load %arg3[%c0_161, %c2_162, %c0_163, %c0_164] : memref<1x4x8x8xf32, #tpu.memory_space<vmem>>, vector<1x1x8x8xf32>
    %710 = vector.shape_cast %709 : vector<1x1x8x8xf32> to vector<8x8xf32>
    %711 = vector.shape_cast %708 : vector<8x8xf32> to vector<1x1x8x8xf32>
    tpu.vector_store %arg3[%c0_161, %c2_162, %c0_163, %c0_164], %711 {strides = array<i32>} : memref<1x4x8x8xf32, #tpu.memory_space<vmem>>, vector<1x1x8x8xf32>,
    %cst_165 = arith.constant 0.000000e+00 : f32
    %712 = vector.broadcast %cst_165 : f32 to vector<8x8xf32>
    %713 = arith.cmpf ogt, %687, %712 : vector<8x8xf32>
    %cst_166 = arith.constant 1.000000e-01 : f32
    %714 = vector.broadcast %cst_166 : f32 to vector<8x8xf32>
    %715 = arith.mulf %714, %687 : vector<8x8xf32>
    %716 = arith.select %713, %687, %715 : vector<8x8xi1>, vector<8x8xf32>
    %c0_167 = arith.constant 0 : index
    %c3_168 = arith.constant 3 : index
    %c0_169 = arith.constant 0 : index
    %c0_170 = arith.constant 0 : index
    %717 = vector.load %arg3[%c0_167, %c3_168, %c0_169, %c0_170] : memref<1x4x8x8xf32, #tpu.memory_space<vmem>>, vector<1x1x8x8xf32>
    %718 = vector.shape_cast %717 : vector<1x1x8x8xf32> to vector<8x8xf32>
    %719 = vector.shape_cast %716 : vector<8x8xf32> to vector<1x1x8x8xf32>
    tpu.vector_store %arg3[%c0_167, %c3_168, %c0_169, %c0_170], %719 {strides = array<i32>} : memref<1x4x8x8xf32, #tpu.memory_space<vmem>>, vector<1x1x8x8xf32>,
    return
  }
  func.func @transform_0(%arg0: i32) -> i32 {
    %c0_i32 = arith.constant 0 : i32
    %c0_i32_0 = arith.constant 0 : i32
    return %c0_i32 : i32
  }
  func.func @transform_1(%arg0: i32) -> (i32, i32, i32, i32) {
    %c0_i32 = arith.constant 0 : i32
    %c0_i32_0 = arith.constant 0 : i32
    %c0_i32_1 = arith.constant 0 : i32
    %c0_i32_2 = arith.constant 0 : i32
    return %arg0, %c0_i32, %c0_i32_0, %c0_i32_1 : i32, i32, i32, i32
  }
  func.func @transform_2(%arg0: i32) -> (i32, i32, i32, i32) {
    %c0_i32 = arith.constant 0 : i32
    %c0_i32_0 = arith.constant 0 : i32
    %c0_i32_1 = arith.constant 0 : i32
    %c0_i32_2 = arith.constant 0 : i32
    return %arg0, %c0_i32, %c0_i32_0, %c0_i32_1 : i32, i32, i32, i32
  }
}

</mosaic_0001>

<llo_original>
// kernel: downsample_forward.1
$region0: #{downsample_forward.1}
  #allocation0 [shape = 'u32[]', space=smem, size = 0x4, offset = 0x4, fixed_abs, tag = 'smem constant byte address 0x4 - core index']
  #allocation1 [shape = 'u32[72,128]{1,0:T(1,128)}', space=vmem, size = 0x9000, scoped, tag = 'internal scratch']
  %s0 = inlined_call_operand.vmem [shape: f32[144], index: 0, kind: input, shape index: {}]
  %s1 = inlined_call_operand.vmem [shape: bf16[2,16,9,9], index: 1, kind: input, shape index: {}]
  %s2 = inlined_call_operand.hbm [shape: f32[2,4,8,8], index: 2, kind: output, shape index: {}]
  %s3 = sld [smem:[#allocation0]]
  $region45: #{downsample_forward.1} parent=0
    _
  %s5 = ssub.s32 1, %s3
  %s6 = scalar_select 0, %s5, %s3
  $region1: #{downsample_forward.1} parent=0
    #allocation2 [shape = 'u8[1024]{0}', space=smem, size = 0x400, scoped, tag = 'input window, operand 0, single buffered']
    #allocation3 [shape = 's32[2]{0}', space=sflag, size = 0x8, scoped, tag = 'scoped memory for downsample_forward.1']
    #allocation4 [shape = 's32[2]{0}', space=sflag, size = 0x8, scoped, tag = 'scoped memory for downsample_forward.1']
    #allocation5 [shape = 'u8[32768]{0}', space=vmem, size = 0x8000, scoped, tag = 'output window, operand 0']
    %7 = vsyncpa [#allocation4], 0
    %8 = vsyncpa [#allocation3], 0
    %s9 = scalar_lea.sflag [#allocation3], 1
    %10 = vsyncpa %s9, 0
    loop: start=0, step=1, limit=4
    $region2: #{downsample_forward.1} parent=1 // loop_pre_header
      _
    $region3: #{downsample_forward.1} parent=1 // loop_header
      %s12 = sphi 0, %s16
      %p13 = scmp.ge.s32.totalorder %s12, 4
      %s20 = sphi 0, %s20
      %s22 = sphi 0, %s20
      %s23 = sphi 0, %s22
      %s37 = sphi 0, %s23
      %s43 = sphi 0, %s45
      %s46 = sphi 0, %s43
      %s47 = sphi 0, %s46
      %s63 = sphi 0, %s47
      %s69 = sphi 0, %s71
      %s72 = sphi 0, %s69
      %s73 = sphi 0, %s72
      %s89 = sphi 0, %s73
    $region4: #{downsample_forward.1} parent=1 // loop_header_branch
      %15 = sbr.rel (%p13) target = $region8
    $region5: #{downsample_forward.1} parent=1 // loop_body
      %s17 = ssub.s32 %s12, 1
      %s18 = ssub.s32 %s12, 2
      %s19 = sadd.s32 %s12, 1
      %s21 = sadd.s32 %s20, 1
      %p24 = scmp.eq.s32.totalorder %s12, 1
      %p25 = scmp.ne.s32.totalorder %s20, %s22
      %p26 = scmp.eq.s32.totalorder %s12, 0
      %p27 = por %p25, %p26
      %p28 = scmp.ne.s32.totalorder %s20, %s22
      %p29 = scmp.eq.s32.totalorder %s17, 1
      %p30 = por %p28, %p29
      %p31 = scmp.ne.s32.totalorder %s22, %s23
      %p32 = scmp.eq.s32.totalorder %s17, 0
      %p33 = por %p31, %p32
      %p34 = scmp.ne.s32.totalorder %s22, %s23
      %p35 = scmp.eq.s32.totalorder %s18, 1
      %p36 = por %p34, %p35
      %p38 = scmp.ne.s32.totalorder %s23, %s37
      %p39 = scmp.eq.s32.totalorder %s18, 0
      %p40 = por %p38, %p39
      %s41 = ssub.s32 %s12, %s19
      %p42 = scmp.eq.s32.totalorder %s41, 0
      %s44 = sadd.s32 %s43, 1
      %s45 = scalar_select %p42, %s43, %s44
      %p48 = pneg %p42
      %p49 = scmp.eq.s32.totalorder %s12, 1
      %p50 = por %p48, %p49
      %p51 = scmp.ne.s32.totalorder %s43, %s46
      %p52 = scmp.eq.s32.totalorder %s12, 0
      %p53 = por %p51, %p52
      %p54 = scmp.ne.s32.totalorder %s43, %s46
      %p55 = scmp.eq.s32.totalorder %s17, 1
      %p56 = por %p54, %p55
      %p57 = scmp.ne.s32.totalorder %s46, %s47
      %p58 = scmp.eq.s32.totalorder %s17, 0
      %p59 = por %p57, %p58
      %p60 = scmp.ne.s32.totalorder %s46, %s47
      %p61 = scmp.eq.s32.totalorder %s18, 1
      %p62 = por %p60, %p61
      %p64 = scmp.ne.s32.totalorder %s47, %s63
      %p65 = scmp.eq.s32.totalorder %s18, 0
      %p66 = por %p64, %p65
      %s67 = ssub.s32 %s12, %s19
      %p68 = scmp.eq.s32.totalorder %s67, 0
      %s70 = sadd.s32 %s69, 1
      %s71 = scalar_select %p68, %s69, %s70
      %p74 = pneg %p68
      %p75 = scmp.eq.s32.totalorder %s12, 1
      %p76 = por %p74, %p75
      %p77 = scmp.ne.s32.totalorder %s69, %s72
      %p78 = scmp.eq.s32.totalorder %s12, 0
      %p79 = por %p77, %p78
      %p80 = scmp.ne.s32.totalorder %s69, %s72
      %p81 = scmp.eq.s32.totalorder %s17, 1
      %p82 = por %p80, %p81
      %p83 = scmp.ne.s32.totalorder %s72, %s73
      %p84 = scmp.eq.s32.totalorder %s17, 0
      %p85 = por %p83, %p84
      %p86 = scmp.ne.s32.totalorder %s72, %s73
      %p87 = scmp.eq.s32.totalorder %s18, 1
      %p88 = por %p86, %p87
      %p90 = scmp.ne.s32.totalorder %s73, %s89
      %p91 = scmp.eq.s32.totalorder %s18, 0
      %p92 = por %p90, %p91
      %p93 = scmp.le.s32.totalorder 1, %s12
      %p94 = scmp.lt.s32.totalorder %s12, 3
      %p95 = pnand %p93, %p94
      %p96 = pneg %p95
      // Predicated region
      $region9: #{downsample_forward.1} parent=5 // pred_check
        _
      $region10: #{downsample_forward.1} parent=5 // pred_check_branch
        %98 = sbr.rel (%p95) target = $region12
      $region11: #{downsample_forward.1} parent=5 // pred_region
        %s99 = ssub.s32 %s12, 1
        // Predicated region
        $region13: #{downsample_forward.1} parent=11 // pred_check
          %p100 = pneg %p33
        $region14: #{downsample_forward.1} parent=11 // pred_check_branch
          %102 = sbr.rel (%p100) target = $region16
        $region15: #{downsample_forward.1} parent=11 // pred_region
          %104 = vsyncadd [#allocation4], 0
          %s106 = sshll.u32 %s0, 4
          %s107 = int_to_ptr.vmem [resolvable:$true] %s106
          %109 = dma.vmem_to_smem %s107, 32, [#allocation2], [#allocation4]
        $region16: #{downsample_forward.1} parent=11 // pred_fallthru
          _
      $region12: #{downsample_forward.1} parent=5 // pred_fallthru
        _
      %p110 = scmp.lt.s32.totalorder %s12, 2
      // Predicated region
      $region17: #{downsample_forward.1} parent=5 // pred_check
        %p111 = pneg %p110
      $region18: #{downsample_forward.1} parent=5 // pred_check_branch
        %113 = sbr.rel (%p111) target = $region20
      $region19: #{downsample_forward.1} parent=5 // pred_region
        // Predicated region
        $region21: #{downsample_forward.1} parent=19 // pred_check
          %p114 = pneg %p53
        $region22: #{downsample_forward.1} parent=19 // pred_check_branch
          %116 = sbr.rel (%p114) target = $region24
        $region23: #{downsample_forward.1} parent=19 // pred_region
          %p117 = scmp.lt.s32.totalorder %s12, 1
          %s118 = scalar_select %p117, %s12, 1
          %s119 = smul.addr %s118, 32
          %s120 = smul.addr %s119, 4
          %s121 = scalar_lea.vmem %s1, %s120
        $region24: #{downsample_forward.1} parent=19 // pred_fallthru
          _
      $region20: #{downsample_forward.1} parent=5 // pred_fallthru
        _
      %p122 = scmp.le.s32.totalorder 1, %s12
      %p123 = scmp.lt.s32.totalorder %s12, 3
      %p124 = pnand %p122, %p123
      %p125 = pneg %p124
      // Predicated region
      $region25: #{downsample_forward.1} parent=5 // pred_check
        _
      $region26: #{downsample_forward.1} parent=5 // pred_check_branch
        %127 = sbr.rel (%p124) target = $region28
      $region27: #{downsample_forward.1} parent=5 // pred_region
        %s128 = ssub.s32 %s12, 1
        // Predicated region
        $region29: #{downsample_forward.1} parent=27 // pred_check
          %p129 = pneg %p33
        $region30: #{downsample_forward.1} parent=27 // pred_check_branch
          %131 = sbr.rel (%p129) target = $region32
        $region31: #{downsample_forward.1} parent=27 // pred_region
          %133 = dma.done [#allocation4], 32
        $region32: #{downsample_forward.1} parent=27 // pred_fallthru
          _
        %134 = sfence
        %p135 = pneg %p33
        %p136 = pneg %p30
        %p137 = scmp.lt.s32.totalorder %s17, 1
        %s138 = scalar_select %p137, %s17, 1
        %s139 = smul.addr %s138, 32
        %s140 = smul.addr %s139, 4
        %s141 = scalar_lea.vmem %s1, %s140
        %p142 = pneg %p59
        %p143 = pneg %p56
        %p144 = pneg %p85
        %p145 = pneg %p82
        %s146 = sand.u32 %s72, 1
        %s147 = scalar_lea.sflag [#allocation3], %s146
        %s148 = sand.u32 %s72, 1
        %s149 = smul.addr %s148, 32
        %s150 = scalar_lea.vmem [#allocation5], %s149
        %p151 = scmp.lt.s32.totalorder %s17, 1
        %s152 = scalar_select %p151, %s17, 1
        %s153 = smul.addr %s152, 32
        %s154 = smul.addr %s153, 4
        %s155 = scalar_lea.vmem %s1, %s154
        %v156 = vld [vmem:[%s155] sm:$0xf]
        %v157 = vunpack.c.l.bf16 %v156
        %s158 = sld [smem:[#allocation2]]
        %v159 = vstv %s158
        %v160 = vmul.f32 %v159, %v157
        %v161 = vadd.f32 %v160, 0.0
        %s162 = sld [smem:[#allocation2 + $0x24]]
        %v163 = vstv %s162
        %v164 = vmul.f32 %v163, %v157
        %v165 = vadd.f32 %v164, 0.0
        %s166 = sld [smem:[#allocation2 + $0x48]]
        %v167 = vstv %s166
        %v168 = vmul.f32 %v167, %v157
        %v169 = vadd.f32 %v168, 0.0
        %s170 = sld [smem:[#allocation2 + $0x6c]]
        %v171 = vstv %s170
        %v172 = vmul.f32 %v171, %v157
        %v173 = vadd.f32 %v172, 0.0
        %s174 = scalar_lea.vmem %s155, 8
        %v175 = vld [vmem:[%s174] sm:$0xf]
        %v176 = vunpack.c.l.bf16 %v175
        %s177 = sld [smem:[#allocation2 + $0x9]]
        %v178 = vstv %s177
        %v179 = vmul.f32 %v178, %v176
        %v180 = vadd.f32 %v161, %v179
        %s181 = sld [smem:[#allocation2 + $0x2d]]
        %v182 = vstv %s181
        %v183 = vmul.f32 %v182, %v176
        %v184 = vadd.f32 %v165, %v183
        %s185 = sld [smem:[#allocation2 + $0x51]]
        %v186 = vstv %s185
        %v187 = vmul.f32 %v186, %v176
        %v188 = vadd.f32 %v169, %v187
        %s189 = sld [smem:[#allocation2 + $0x75]]
        %v190 = vstv %s189
        %v191 = vmul.f32 %v190, %v176
        %v192 = vadd.f32 %v173, %v191
        %s193 = scalar_lea.vmem %s155, 16
        %v194 = vld [vmem:[%s193] sm:$0xf]
        %v195 = vunpack.c.l.bf16 %v194
        %s196 = sld [smem:[#allocation2 + $0x12]]
        %v197 = vstv %s196
        %v198 = vmul.f32 %v197, %v195
        %v199 = vadd.f32 %v180, %v198
        %s200 = sld [smem:[#allocation2 + $0x36]]
        %v201 = vstv %s200
        %v202 = vmul.f32 %v201, %v195
        %v203 = vadd.f32 %v184, %v202
        %s204 = sld [smem:[#allocation2 + $0x5a]]
        %v205 = vstv %s204
        %v206 = vmul.f32 %v205, %v195
        %v207 = vadd.f32 %v188, %v206
        %s208 = sld [smem:[#allocation2 + $0x7e]]
        %v209 = vstv %s208
        %v210 = vmul.f32 %v209, %v195
        %v211 = vadd.f32 %v192, %v210
        %s212 = scalar_lea.vmem %s155, 24
        %v213 = vld [vmem:[%s212] sm:$0xf]
        %v214 = vunpack.c.l.bf16 %v213
        %s215 = sld [smem:[#allocation2 + $0x1b]]
        %v216 = vstv %s215
        %v217 = vmul.f32 %v216, %v214
        %v218 = vadd.f32 %v199, %v217
        %s219 = sld [smem:[#allocation2 + $0x3f]]
        %v220 = vstv %s219
        %v221 = vmul.f32 %v220, %v214
        %v222 = vadd.f32 %v203, %v221
        %s223 = sld [smem:[#allocation2 + $0x63]]
        %v224 = vstv %s223
        %v225 = vmul.f32 %v224, %v214
        %v226 = vadd.f32 %v207, %v225
        %s227 = sld [smem:[#allocation2 + $0x87]]
        %v228 = vstv %s227
        %v229 = vmul.f32 %v228, %v214
        %v230 = vadd.f32 %v211, %v229
        %s231 = scalar_lea.vmem %s155, 32
        %v232 = vld [vmem:[%s231] sm:$0xf]
        %v233 = vunpack.c.l.bf16 %v232
        %s234 = sld [smem:[#allocation2 + $0x1]]
        %v235 = vstv %s234
        %v236 = vmul.f32 %v235, %v233
        %v237 = vadd.f32 %v218, %v236
        %s238 = sld [smem:[#allocation2 + $0x25]]
        %v239 = vstv %s238
        %v240 = vmul.f32 %v239, %v233
        %v241 = vadd.f32 %v222, %v240
        %s242 = sld [smem:[#allocation2 + $0x49]]
        %v243 = vstv %s242
        %v244 = vmul.f32 %v243, %v233
        %v245 = vadd.f32 %v226, %v244
        %s246 = sld [smem:[#allocation2 + $0x6d]]
        %v247 = vstv %s246
        %v248 = vmul.f32 %v247, %v233
        %v249 = vadd.f32 %v230, %v248
        %s250 = scalar_lea.vmem %s155, 40
        %v251 = vld [vmem:[%s250] sm:$0xf]
        %v252 = vunpack.c.l.bf16 %v251
        %s253 = sld [smem:[#allocation2 + $0xa]]
        %v254 = vstv %s253
        %v255 = vmul.f32 %v254, %v252
        %v256 = vadd.f32 %v237, %v255
        %s257 = sld [smem:[#allocation2 + $0x2e]]
        %v258 = vstv %s257
        %v259 = vmul.f32 %v258, %v252
        %v260 = vadd.f32 %v241, %v259
        %s261 = sld [smem:[#allocation2 + $0x52]]
        %v262 = vstv %s261
        %v263 = vmul.f32 %v262, %v252
        %v264 = vadd.f32 %v245, %v263
        %s265 = sld [smem:[#allocation2 + $0x76]]
        %v266 = vstv %s265
        %v267 = vmul.f32 %v266, %v252
        %v268 = vadd.f32 %v249, %v267
        %s269 = scalar_lea.vmem %s155, 48
        %v270 = vld [vmem:[%s269] sm:$0xf]
        %v271 = vunpack.c.l.bf16 %v270
        %s272 = sld [smem:[#allocation2 + $0x13]]
        %v273 = vstv %s272
        %v274 = vmul.f32 %v273, %v271
        %v275 = vadd.f32 %v256, %v274
        %s276 = sld [smem:[#allocation2 + $0x37]]
        %v277 = vstv %s276
        %v278 = vmul.f32 %v277, %v271
        %v279 = vadd.f32 %v260, %v278
        %s280 = sld [smem:[#allocation2 + $0x5b]]
        %v281 = vstv %s280
        %v282 = vmul.f32 %v281, %v271
        %v283 = vadd.f32 %v264, %v282
        %s284 = sld [smem:[#allocation2 + $0x7f]]
        %v285 = vstv %s284
        %v286 = vmul.f32 %v285, %v271
        %v287 = vadd.f32 %v268, %v286
        %s288 = scalar_lea.vmem %s155, 56
        %v289 = vld [vmem:[%s288] sm:$0xf]
        %v290 = vunpack.c.l.bf16 %v289
        %s291 = sld [smem:[#allocation2 + $0x1c]]
        %v292 = vstv %s291
        %v293 = vmul.f32 %v292, %v290
        %v294 = vadd.f32 %v275, %v293
        %s295 = sld [smem:[#allocation2 + $0x40]]
        %v296 = vstv %s295
        %v297 = vmul.f32 %v296, %v290
        %v298 = vadd.f32 %v279, %v297
        %s299 = sld [smem:[#allocation2 + $0x64]]
        %v300 = vstv %s299
        %v301 = vmul.f32 %v300, %v290
        %v302 = vadd.f32 %v283, %v301
        %s303 = sld [smem:[#allocation2 + $0x88]]
        %v304 = vstv %s303
        %v305 = vmul.f32 %v304, %v290
        %v306 = vadd.f32 %v287, %v305
        %s307 = sld [smem:[#allocation2 + $0x2]]
        %v308 = vstv %s307
        %v309 = vmul.f32 %v308, %v157
        %311 = vrot.lane.b32.xlu0 %v309, 127
        %v312 = vpop.permute.xlu0 %311
        %v314 = vadd.f32 %v294, %v312
        %s315 = sld [smem:[#allocation2 + $0x26]]
        %v316 = vstv %s315
        %v317 = vmul.f32 %v316, %v157
        %319 = vrot.lane.b32.xlu0 %v317, 127
        %v320 = vpop.permute.xlu0 %319
        %v322 = vadd.f32 %v298, %v320
        %s323 = sld [smem:[#allocation2 + $0x4a]]
        %v324 = vstv %s323
        %v325 = vmul.f32 %v324, %v157
        %327 = vrot.lane.b32.xlu0 %v325, 127
        %v328 = vpop.permute.xlu0 %327
        %v330 = vadd.f32 %v302, %v328
        %s331 = sld [smem:[#allocation2 + $0x6e]]
        %v332 = vstv %s331
        %v333 = vmul.f32 %v332, %v157
        %335 = vrot.lane.b32.xlu0 %v333, 127
        %v336 = vpop.permute.xlu0 %335
        %v338 = vadd.f32 %v306, %v336
        %s339 = sld [smem:[#allocation2 + $0xb]]
        %v340 = vstv %s339
        %v341 = vmul.f32 %v340, %v176
        %343 = vrot.lane.b32.xlu0 %v341, 127
        %v344 = vpop.permute.xlu0 %343
        %v346 = vadd.f32 %v314, %v344
        %s347 = sld [smem:[#allocation2 + $0x2f]]
        %v348 = vstv %s347
        %v349 = vmul.f32 %v348, %v176
        %351 = vrot.lane.b32.xlu0 %v349, 127
        %v352 = vpop.permute.xlu0 %351
        %v354 = vadd.f32 %v322, %v352
        %s355 = sld [smem:[#allocation2 + $0x53]]
        %v356 = vstv %s355
        %v357 = vmul.f32 %v356, %v176
        %359 = vrot.lane.b32.xlu0 %v357, 127
        %v360 = vpop.permute.xlu0 %359
        %v362 = vadd.f32 %v330, %v360
        %s363 = sld [smem:[#allocation2 + $0x77]]
        %v364 = vstv %s363
        %v365 = vmul.f32 %v364, %v176
        %367 = vrot.lane.b32.xlu0 %v365, 127
        %v368 = vpop.permute.xlu0 %367
        %v370 = vadd.f32 %v338, %v368
        %s371 = sld [smem:[#allocation2 + $0x14]]
        %v372 = vstv %s371
        %v373 = vmul.f32 %v372, %v195
        %375 = vrot.lane.b32.xlu0 %v373, 127
        %v376 = vpop.permute.xlu0 %375
        %v378 = vadd.f32 %v346, %v376
        %s379 = sld [smem:[#allocation2 + $0x38]]
        %v380 = vstv %s379
        %v381 = vmul.f32 %v380, %v195
        %383 = vrot.lane.b32.xlu0 %v381, 127
        %v384 = vpop.permute.xlu0 %383
        %v386 = vadd.f32 %v354, %v384
        %s387 = sld [smem:[#allocation2 + $0x5c]]
        %v388 = vstv %s387
        %v389 = vmul.f32 %v388, %v195
        %391 = vrot.lane.b32.xlu0 %v389, 127
        %v392 = vpop.permute.xlu0 %391
        %v394 = vadd.f32 %v362, %v392
        %s395 = sld [smem:[#allocation2 + $0x80]]
        %v396 = vstv %s395
        %v397 = vmul.f32 %v396, %v195
        %399 = vrot.lane.b32.xlu0 %v397, 127
        %v400 = vpop.permute.xlu0 %399
        %v402 = vadd.f32 %v370, %v400
        %s403 = sld [smem:[#allocation2 + $0x1d]]
        %v404 = vstv %s403
        %v405 = vmul.f32 %v404, %v214
        %407 = vrot.lane.b32.xlu0 %v405, 127
        %v408 = vpop.permute.xlu0 %407
        %v410 = vadd.f32 %v378, %v408
        %s411 = sld [smem:[#allocation2 + $0x41]]
        %v412 = vstv %s411
        %v413 = vmul.f32 %v412, %v214
        %415 = vrot.lane.b32.xlu0 %v413, 127
        %v416 = vpop.permute.xlu0 %415
        %v418 = vadd.f32 %v386, %v416
        %s419 = sld [smem:[#allocation2 + $0x65]]
        %v420 = vstv %s419
        %v421 = vmul.f32 %v420, %v214
        %423 = vrot.lane.b32.xlu0 %v421, 127
        %v424 = vpop.permute.xlu0 %423
        %v426 = vadd.f32 %v394, %v424
        %s427 = sld [smem:[#allocation2 + $0x89]]
        %v428 = vstv %s427
        %v429 = vmul.f32 %v428, %v214
        %431 = vrot.lane.b32.xlu0 %v429, 127
        %v432 = vpop.permute.xlu0 %431
        %v434 = vadd.f32 %v402, %v432
        %s435 = scalar_lea.vmem %s155, 64
        %v436 = vld [vmem:[%s435] sm:$0xf]
        %v437 = vunpack.c.l.bf16 %v436
        %s438 = sld [smem:[#allocation2 + $0x3]]
        %v439 = vstv %s438
        %v440 = vmul.f32 %v439, %v437
        %v441 = vadd.f32 %v410, %v440
        %s442 = sld [smem:[#allocation2 + $0x27]]
        %v443 = vstv %s442
        %v444 = vmul.f32 %v443, %v437
        %v445 = vadd.f32 %v418, %v444
        %s446 = sld [smem:[#allocation2 + $0x4b]]
        %v447 = vstv %s446
        %v448 = vmul.f32 %v447, %v437
        %v449 = vadd.f32 %v426, %v448
        %s450 = sld [smem:[#allocation2 + $0x6f]]
        %v451 = vstv %s450
        %v452 = vmul.f32 %v451, %v437
        %v453 = vadd.f32 %v434, %v452
        %s454 = scalar_lea.vmem %s155, 72
        %v455 = vld [vmem:[%s454] sm:$0xf]
        %v456 = vunpack.c.l.bf16 %v455
        %s457 = sld [smem:[#allocation2 + $0xc]]
        %v458 = vstv %s457
        %v459 = vmul.f32 %v458, %v456
        %v460 = vadd.f32 %v441, %v459
        %s461 = sld [smem:[#allocation2 + $0x30]]
        %v462 = vstv %s461
        %v463 = vmul.f32 %v462, %v456
        %v464 = vadd.f32 %v445, %v463
        %s465 = sld [smem:[#allocation2 + $0x54]]
        %v466 = vstv %s465
        %v467 = vmul.f32 %v466, %v456
        %v468 = vadd.f32 %v449, %v467
        %s469 = sld [smem:[#allocation2 + $0x78]]
        %v470 = vstv %s469
        %v471 = vmul.f32 %v470, %v456
        %v472 = vadd.f32 %v453, %v471
        %s473 = scalar_lea.vmem %s155, 80
        %v474 = vld [vmem:[%s473] sm:$0xf]
        %v475 = vunpack.c.l.bf16 %v474
        %s476 = sld [smem:[#allocation2 + $0x15]]
        %v477 = vstv %s476
        %v478 = vmul.f32 %v477, %v475
        %v479 = vadd.f32 %v460, %v478
        %s480 = sld [smem:[#allocation2 + $0x39]]
        %v481 = vstv %s480
        %v482 = vmul.f32 %v481, %v475
        %v483 = vadd.f32 %v464, %v482
        %s484 = sld [smem:[#allocation2 + $0x5d]]
        %v485 = vstv %s484
        %v486 = vmul.f32 %v485, %v475
        %v487 = vadd.f32 %v468, %v486
        %s488 = sld [smem:[#allocation2 + $0x81]]
        %v489 = vstv %s488
        %v490 = vmul.f32 %v489, %v475
        %v491 = vadd.f32 %v472, %v490
        %s492 = scalar_lea.vmem %s155, 88
        %v493 = vld [vmem:[%s492] sm:$0xf]
        %v494 = vunpack.c.l.bf16 %v493
        %s495 = sld [smem:[#allocation2 + $0x1e]]
        %v496 = vstv %s495
        %v497 = vmul.f32 %v496, %v494
        %v498 = vadd.f32 %v479, %v497
        %s499 = sld [smem:[#allocation2 + $0x42]]
        %v500 = vstv %s499
        %v501 = vmul.f32 %v500, %v494
        %v502 = vadd.f32 %v483, %v501
        %s503 = sld [smem:[#allocation2 + $0x66]]
        %v504 = vstv %s503
        %v505 = vmul.f32 %v504, %v494
        %v506 = vadd.f32 %v487, %v505
        %s507 = sld [smem:[#allocation2 + $0x8a]]
        %v508 = vstv %s507
        %v509 = vmul.f32 %v508, %v494
        %v510 = vadd.f32 %v491, %v509
        %s511 = scalar_lea.vmem %s155, 96
        %v512 = vld [vmem:[%s511] sm:$0xf]
        %v513 = vunpack.c.l.bf16 %v512
        %s514 = sld [smem:[#allocation2 + $0x4]]
        %v515 = vstv %s514
        %v516 = vmul.f32 %v515, %v513
        %v517 = vadd.f32 %v498, %v516
        %s518 = sld [smem:[#allocation2 + $0x28]]
        %v519 = vstv %s518
        %v520 = vmul.f32 %v519, %v513
        %v521 = vadd.f32 %v502, %v520
        %s522 = sld [smem:[#allocation2 + $0x4c]]
        %v523 = vstv %s522
        %v524 = vmul.f32 %v523, %v513
        %v525 = vadd.f32 %v506, %v524
        %s526 = sld [smem:[#allocation2 + $0x70]]
        %v527 = vstv %s526
        %v528 = vmul.f32 %v527, %v513
        %v529 = vadd.f32 %v510, %v528
        %s530 = scalar_lea.vmem %s155, 104
        %v531 = vld [vmem:[%s530] sm:$0xf]
        %v532 = vunpack.c.l.bf16 %v531
        %s533 = sld [smem:[#allocation2 + $0xd]]
        %v534 = vstv %s533
        %v535 = vmul.f32 %v534, %v532
        %v536 = vadd.f32 %v517, %v535
        %s537 = sld [smem:[#allocation2 + $0x31]]
        %v538 = vstv %s537
        %v539 = vmul.f32 %v538, %v532
        %v540 = vadd.f32 %v521, %v539
        %s541 = sld [smem:[#allocation2 + $0x55]]
        %v542 = vstv %s541
        %v543 = vmul.f32 %v542, %v532
        %v544 = vadd.f32 %v525, %v543
        %s545 = sld [smem:[#allocation2 + $0x79]]
        %v546 = vstv %s545
        %v547 = vmul.f32 %v546, %v532
        %v548 = vadd.f32 %v529, %v547
        %s549 = scalar_lea.vmem %s155, 112
        %v550 = vld [vmem:[%s549] sm:$0xf]
        %v551 = vunpack.c.l.bf16 %v550
        %s552 = sld [smem:[#allocation2 + $0x16]]
        %v553 = vstv %s552
        %v554 = vmul.f32 %v553, %v551
        %v555 = vadd.f32 %v536, %v554
        %s556 = sld [smem:[#allocation2 + $0x3a]]
        %v557 = vstv %s556
        %v558 = vmul.f32 %v557, %v551
        %v559 = vadd.f32 %v540, %v558
        %s560 = sld [smem:[#allocation2 + $0x5e]]
        %v561 = vstv %s560
        %v562 = vmul.f32 %v561, %v551
        %v563 = vadd.f32 %v544, %v562
        %s564 = sld [smem:[#allocation2 + $0x82]]
        %v565 = vstv %s564
        %v566 = vmul.f32 %v565, %v551
        %v567 = vadd.f32 %v548, %v566
        %s568 = scalar_lea.vmem %s155, 120
        %v569 = vld [vmem:[%s568] sm:$0xf]
        %v570 = vunpack.c.l.bf16 %v569
        %s571 = sld [smem:[#allocation2 + $0x1f]]
        %v572 = vstv %s571
        %v573 = vmul.f32 %v572, %v570
        %v574 = vadd.f32 %v555, %v573
        %s575 = sld [smem:[#allocation2 + $0x43]]
        %v576 = vstv %s575
        %v577 = vmul.f32 %v576, %v570
        %v578 = vadd.f32 %v559, %v577
        %s579 = sld [smem:[#allocation2 + $0x67]]
        %v580 = vstv %s579
        %v581 = vmul.f32 %v580, %v570
        %v582 = vadd.f32 %v563, %v581
        %s583 = sld [smem:[#allocation2 + $0x8b]]
        %v584 = vstv %s583
        %v585 = vmul.f32 %v584, %v570
        %v586 = vadd.f32 %v567, %v585
        %s587 = sld [smem:[#allocation2 + $0x5]]
        %v588 = vstv %s587
        %v589 = vmul.f32 %v588, %v437
        %591 = vrot.lane.b32.xlu0 %v589, 127
        %v592 = vpop.permute.xlu0 %591
        %v594 = vadd.f32 %v574, %v592
        %s595 = sld [smem:[#allocation2 + $0x29]]
        %v596 = vstv %s595
        %v597 = vmul.f32 %v596, %v437
        %599 = vrot.lane.b32.xlu0 %v597, 127
        %v600 = vpop.permute.xlu0 %599
        %v602 = vadd.f32 %v578, %v600
        %s603 = sld [smem:[#allocation2 + $0x4d]]
        %v604 = vstv %s603
        %v605 = vmul.f32 %v604, %v437
        %607 = vrot.lane.b32.xlu0 %v605, 127
        %v608 = vpop.permute.xlu0 %607
        %v610 = vadd.f32 %v582, %v608
        %s611 = sld [smem:[#allocation2 + $0x71]]
        %v612 = vstv %s611
        %v613 = vmul.f32 %v612, %v437
        %615 = vrot.lane.b32.xlu0 %v613, 127
        %v616 = vpop.permute.xlu0 %615
        %v618 = vadd.f32 %v586, %v616
        %s619 = sld [smem:[#allocation2 + $0xe]]
        %v620 = vstv %s619
        %v621 = vmul.f32 %v620, %v456
        %623 = vrot.lane.b32.xlu0 %v621, 127
        %v624 = vpop.permute.xlu0 %623
        %v626 = vadd.f32 %v594, %v624
        %s627 = sld [smem:[#allocation2 + $0x32]]
        %v628 = vstv %s627
        %v629 = vmul.f32 %v628, %v456
        %631 = vrot.lane.b32.xlu0 %v629, 127
        %v632 = vpop.permute.xlu0 %631
        %v634 = vadd.f32 %v602, %v632
        %s635 = sld [smem:[#allocation2 + $0x56]]
        %v636 = vstv %s635
        %v637 = vmul.f32 %v636, %v456
        %639 = vrot.lane.b32.xlu0 %v637, 127
        %v640 = vpop.permute.xlu0 %639
        %v642 = vadd.f32 %v610, %v640
        %s643 = sld [smem:[#allocation2 + $0x7a]]
        %v644 = vstv %s643
        %v645 = vmul.f32 %v644, %v456
        %647 = vrot.lane.b32.xlu0 %v645, 127
        %v648 = vpop.permute.xlu0 %647
        %v650 = vadd.f32 %v618, %v648
        %s651 = sld [smem:[#allocation2 + $0x17]]
        %v652 = vstv %s651
        %v653 = vmul.f32 %v652, %v475
        %655 = vrot.lane.b32.xlu0 %v653, 127
        %v656 = vpop.permute.xlu0 %655
        %v658 = vadd.f32 %v626, %v656
        %s659 = sld [smem:[#allocation2 + $0x3b]]
        %v660 = vstv %s659
        %v661 = vmul.f32 %v660, %v475
        %663 = vrot.lane.b32.xlu0 %v661, 127
        %v664 = vpop.permute.xlu0 %663
        %v666 = vadd.f32 %v634, %v664
        %s667 = sld [smem:[#allocation2 + $0x5f]]
        %v668 = vstv %s667
        %v669 = vmul.f32 %v668, %v475
        %671 = vrot.lane.b32.xlu0 %v669, 127
        %v672 = vpop.permute.xlu0 %671
        %v674 = vadd.f32 %v642, %v672
        %s675 = sld [smem:[#allocation2 + $0x83]]
        %v676 = vstv %s675
        %v677 = vmul.f32 %v676, %v475
        %679 = vrot.lane.b32.xlu0 %v677, 127
        %v680 = vpop.permute.xlu0 %679
        %v682 = vadd.f32 %v650, %v680
        %s683 = sld [smem:[#allocation2 + $0x20]]
        %v684 = vstv %s683
        %v685 = vmul.f32 %v684, %v494
        %687 = vrot.lane.b32.xlu0 %v685, 127
        %v688 = vpop.permute.xlu0 %687
        %v690 = vadd.f32 %v658, %v688
        %s691 = sld [smem:[#allocation2 + $0x44]]
        %v692 = vstv %s691
        %v693 = vmul.f32 %v692, %v494
        %695 = vrot.lane.b32.xlu0 %v693, 127
        %v696 = vpop.permute.xlu0 %695
        %v698 = vadd.f32 %v666, %v696
        %s699 = sld [smem:[#allocation2 + $0x68]]
        %v700 = vstv %s699
        %v701 = vmul.f32 %v700, %v494
        %703 = vrot.lane.b32.xlu0 %v701, 127
        %v704 = vpop.permute.xlu0 %703
        %v706 = vadd.f32 %v674, %v704
        %s707 = sld [smem:[#allocation2 + $0x8c]]
        %v708 = vstv %s707
        %v709 = vmul.f32 %v708, %v494
        %711 = vrot.lane.b32.xlu0 %v709, 127
        %v712 = vpop.permute.xlu0 %711
        %v714 = vadd.f32 %v682, %v712
        %v715 = vld [vmem:[%s155] sm:$0xf]
        %v716 = vld [vmem:[%s155 + $0x4] sm:$0x1]
        %v717 = vunpack.c.l.bf16 %v715
        %v718 = vunpack.c.l.bf16 %v716
        %s719 = sld [smem:[#allocation2 + $0x6]]
        %v720 = vstv %s719
        %v721 = vmul.f32 %v720, %v717
        %v722 = vmul.f32 %v720, %v718
        %vm725 = vcmask 1046528
        %v726 = vrot.slane %v721, 1
        %v727 = vrot.slane %v722, 1
        %v728 = vsel %vm725, %v726, %v727
        %v730 = vadd.f32 %v690, %v728
        %s731 = sld [smem:[#allocation2 + $0x2a]]
        %v732 = vstv %s731
        %v733 = vmul.f32 %v732, %v717
        %v734 = vmul.f32 %v732, %v718
        %v737 = vrot.slane %v733, 1
        %v738 = vrot.slane %v734, 1
        %v739 = vsel %vm725, %v737, %v738
        %v741 = vadd.f32 %v698, %v739
        %s742 = sld [smem:[#allocation2 + $0x4e]]
        %v743 = vstv %s742
        %v744 = vmul.f32 %v743, %v717
        %v745 = vmul.f32 %v743, %v718
        %v748 = vrot.slane %v744, 1
        %v749 = vrot.slane %v745, 1
        %v750 = vsel %vm725, %v748, %v749
        %v752 = vadd.f32 %v706, %v750
        %s753 = sld [smem:[#allocation2 + $0x72]]
        %v754 = vstv %s753
        %v755 = vmul.f32 %v754, %v717
        %v756 = vmul.f32 %v754, %v718
        %v759 = vrot.slane %v755, 1
        %v760 = vrot.slane %v756, 1
        %v761 = vsel %vm725, %v759, %v760
        %v763 = vadd.f32 %v714, %v761
        %v764 = vld [vmem:[%s174] sm:$0xf]
        %v765 = vld [vmem:[%s174 + $0x4] sm:$0x1]
        %v766 = vunpack.c.l.bf16 %v764
        %v767 = vunpack.c.l.bf16 %v765
        %s768 = sld [smem:[#allocation2 + $0xf]]
        %v769 = vstv %s768
        %v770 = vmul.f32 %v769, %v766
        %v771 = vmul.f32 %v769, %v767
        %v774 = vrot.slane %v770, 1
        %v775 = vrot.slane %v771, 1
        %v776 = vsel %vm725, %v774, %v775
        %v778 = vadd.f32 %v730, %v776
        %s779 = sld [smem:[#allocation2 + $0x33]]
        %v780 = vstv %s779
        %v781 = vmul.f32 %v780, %v766
        %v782 = vmul.f32 %v780, %v767
        %v785 = vrot.slane %v781, 1
        %v786 = vrot.slane %v782, 1
        %v787 = vsel %vm725, %v785, %v786
        %v789 = vadd.f32 %v741, %v787
        %s790 = sld [smem:[#allocation2 + $0x57]]
        %v791 = vstv %s790
        %v792 = vmul.f32 %v791, %v766
        %v793 = vmul.f32 %v791, %v767
        %v796 = vrot.slane %v792, 1
        %v797 = vrot.slane %v793, 1
        %v798 = vsel %vm725, %v796, %v797
        %v800 = vadd.f32 %v752, %v798
        %s801 = sld [smem:[#allocation2 + $0x7b]]
        %v802 = vstv %s801
        %v803 = vmul.f32 %v802, %v766
        %v804 = vmul.f32 %v802, %v767
        %v807 = vrot.slane %v803, 1
        %v808 = vrot.slane %v804, 1
        %v809 = vsel %vm725, %v807, %v808
        %v811 = vadd.f32 %v763, %v809
        %v812 = vld [vmem:[%s193] sm:$0xf]
        %v813 = vld [vmem:[%s193 + $0x4] sm:$0x1]
        %v814 = vunpack.c.l.bf16 %v812
        %v815 = vunpack.c.l.bf16 %v813
        %s816 = sld [smem:[#allocation2 + $0x18]]
        %v817 = vstv %s816
        %v818 = vmul.f32 %v817, %v814
        %v819 = vmul.f32 %v817, %v815
        %v822 = vrot.slane %v818, 1
        %v823 = vrot.slane %v819, 1
        %v824 = vsel %vm725, %v822, %v823
        %v826 = vadd.f32 %v778, %v824
        %s827 = sld [smem:[#allocation2 + $0x3c]]
        %v828 = vstv %s827
        %v829 = vmul.f32 %v828, %v814
        %v830 = vmul.f32 %v828, %v815
        %v833 = vrot.slane %v829, 1
        %v834 = vrot.slane %v830, 1
        %v835 = vsel %vm725, %v833, %v834
        %v837 = vadd.f32 %v789, %v835
        %s838 = sld [smem:[#allocation2 + $0x60]]
        %v839 = vstv %s838
        %v840 = vmul.f32 %v839, %v814
        %v841 = vmul.f32 %v839, %v815
        %v844 = vrot.slane %v840, 1
        %v845 = vrot.slane %v841, 1
        %v846 = vsel %vm725, %v844, %v845
        %v848 = vadd.f32 %v800, %v846
        %s849 = sld [smem:[#allocation2 + $0x84]]
        %v850 = vstv %s849
        %v851 = vmul.f32 %v850, %v814
        %v852 = vmul.f32 %v850, %v815
        %v855 = vrot.slane %v851, 1
        %v856 = vrot.slane %v852, 1
        %v857 = vsel %vm725, %v855, %v856
        %v859 = vadd.f32 %v811, %v857
        %v860 = vld [vmem:[%s212] sm:$0xf]
        %v861 = vld [vmem:[%s212 + $0x4] sm:$0x1]
        %v862 = vunpack.c.l.bf16 %v860
        %v863 = vunpack.c.l.bf16 %v861
        %s864 = sld [smem:[#allocation2 + $0x21]]
        %v865 = vstv %s864
        %v866 = vmul.f32 %v865, %v862
        %v867 = vmul.f32 %v865, %v863
        %v870 = vrot.slane %v866, 1
        %v871 = vrot.slane %v867, 1
        %v872 = vsel %vm725, %v870, %v871
        %v874 = vadd.f32 %v826, %v872
        %s875 = sld [smem:[#allocation2 + $0x45]]
        %v876 = vstv %s875
        %v877 = vmul.f32 %v876, %v862
        %v878 = vmul.f32 %v876, %v863
        %v881 = vrot.slane %v877, 1
        %v882 = vrot.slane %v878, 1
        %v883 = vsel %vm725, %v881, %v882
        %v885 = vadd.f32 %v837, %v883
        %s886 = sld [smem:[#allocation2 + $0x69]]
        %v887 = vstv %s886
        %v888 = vmul.f32 %v887, %v862
        %v889 = vmul.f32 %v887, %v863
        %v892 = vrot.slane %v888, 1
        %v893 = vrot.slane %v889, 1
        %v894 = vsel %vm725, %v892, %v893
        %v896 = vadd.f32 %v848, %v894
        %s897 = sld [smem:[#allocation2 + $0x8d]]
        %v898 = vstv %s897
        %v899 = vmul.f32 %v898, %v862
        %v900 = vmul.f32 %v898, %v863
        %v903 = vrot.slane %v899, 1
        %v904 = vrot.slane %v900, 1
        %v905 = vsel %vm725, %v903, %v904
        %v907 = vadd.f32 %v859, %v905
        %v908 = vld [vmem:[%s231] sm:$0xf]
        %v909 = vld [vmem:[%s231 + $0x4] sm:$0x1]
        %v910 = vunpack.c.l.bf16 %v908
        %v911 = vunpack.c.l.bf16 %v909
        %s912 = sld [smem:[#allocation2 + $0x7]]
        %v913 = vstv %s912
        %v914 = vmul.f32 %v913, %v910
        %v915 = vmul.f32 %v913, %v911
        %v918 = vrot.slane %v914, 1
        %v919 = vrot.slane %v915, 1
        %v920 = vsel %vm725, %v918, %v919
        %v922 = vadd.f32 %v874, %v920
        %s923 = sld [smem:[#allocation2 + $0x2b]]
        %v924 = vstv %s923
        %v925 = vmul.f32 %v924, %v910
        %v926 = vmul.f32 %v924, %v911
        %v929 = vrot.slane %v925, 1
        %v930 = vrot.slane %v926, 1
        %v931 = vsel %vm725, %v929, %v930
        %v933 = vadd.f32 %v885, %v931
        %s934 = sld [smem:[#allocation2 + $0x4f]]
        %v935 = vstv %s934
        %v936 = vmul.f32 %v935, %v910
        %v937 = vmul.f32 %v935, %v911
        %v940 = vrot.slane %v936, 1
        %v941 = vrot.slane %v937, 1
        %v942 = vsel %vm725, %v940, %v941
        %v944 = vadd.f32 %v896, %v942
        %s945 = sld [smem:[#allocation2 + $0x73]]
        %v946 = vstv %s945
        %v947 = vmul.f32 %v946, %v910
        %v948 = vmul.f32 %v946, %v911
        %v951 = vrot.slane %v947, 1
        %v952 = vrot.slane %v948, 1
        %v953 = vsel %vm725, %v951, %v952
        %v955 = vadd.f32 %v907, %v953
        %v956 = vld [vmem:[%s250] sm:$0xf]
        %v957 = vld [vmem:[%s250 + $0x4] sm:$0x1]
        %v958 = vunpack.c.l.bf16 %v956
        %v959 = vunpack.c.l.bf16 %v957
        %s960 = sld [smem:[#allocation2 + $0x10]]
        %v961 = vstv %s960
        %v962 = vmul.f32 %v961, %v958
        %v963 = vmul.f32 %v961, %v959
        %v966 = vrot.slane %v962, 1
        %v967 = vrot.slane %v963, 1
        %v968 = vsel %vm725, %v966, %v967
        %v970 = vadd.f32 %v922, %v968
        %s971 = sld [smem:[#allocation2 + $0x34]]
        %v972 = vstv %s971
        %v973 = vmul.f32 %v972, %v958
        %v974 = vmul.f32 %v972, %v959
        %v977 = vrot.slane %v973, 1
        %v978 = vrot.slane %v974, 1
        %v979 = vsel %vm725, %v977, %v978
        %v981 = vadd.f32 %v933, %v979
        %s982 = sld [smem:[#allocation2 + $0x58]]
        %v983 = vstv %s982
        %v984 = vmul.f32 %v983, %v958
        %v985 = vmul.f32 %v983, %v959
        %v988 = vrot.slane %v984, 1
        %v989 = vrot.slane %v985, 1
        %v990 = vsel %vm725, %v988, %v989
        %v992 = vadd.f32 %v944, %v990
        %s993 = sld [smem:[#allocation2 + $0x7c]]
        %v994 = vstv %s993
        %v995 = vmul.f32 %v994, %v958
        %v996 = vmul.f32 %v994, %v959
        %v999 = vrot.slane %v995, 1
        %v1000 = vrot.slane %v996, 1
        %v1001 = vsel %vm725, %v999, %v1000
        %v1003 = vadd.f32 %v955, %v1001
        %v1004 = vld [vmem:[%s269] sm:$0xf]
        %v1005 = vld [vmem:[%s269 + $0x4] sm:$0x1]
        %v1006 = vunpack.c.l.bf16 %v1004
        %v1007 = vunpack.c.l.bf16 %v1005
        %s1008 = sld [smem:[#allocation2 + $0x19]]
        %v1009 = vstv %s1008
        %v1010 = vmul.f32 %v1009, %v1006
        %v1011 = vmul.f32 %v1009, %v1007
        %v1014 = vrot.slane %v1010, 1
        %v1015 = vrot.slane %v1011, 1
        %v1016 = vsel %vm725, %v1014, %v1015
        %v1018 = vadd.f32 %v970, %v1016
        %s1019 = sld [smem:[#allocation2 + $0x3d]]
        %v1020 = vstv %s1019
        %v1021 = vmul.f32 %v1020, %v1006
        %v1022 = vmul.f32 %v1020, %v1007
        %v1025 = vrot.slane %v1021, 1
        %v1026 = vrot.slane %v1022, 1
        %v1027 = vsel %vm725, %v1025, %v1026
        %v1029 = vadd.f32 %v981, %v1027
        %s1030 = sld [smem:[#allocation2 + $0x61]]
        %v1031 = vstv %s1030
        %v1032 = vmul.f32 %v1031, %v1006
        %v1033 = vmul.f32 %v1031, %v1007
        %v1036 = vrot.slane %v1032, 1
        %v1037 = vrot.slane %v1033, 1
        %v1038 = vsel %vm725, %v1036, %v1037
        %v1040 = vadd.f32 %v992, %v1038
        %s1041 = sld [smem:[#allocation2 + $0x85]]
        %v1042 = vstv %s1041
        %v1043 = vmul.f32 %v1042, %v1006
        %v1044 = vmul.f32 %v1042, %v1007
        %v1047 = vrot.slane %v1043, 1
        %v1048 = vrot.slane %v1044, 1
        %v1049 = vsel %vm725, %v1047, %v1048
        %v1051 = vadd.f32 %v1003, %v1049
        %v1052 = vld [vmem:[%s288] sm:$0xf]
        %v1053 = vld [vmem:[%s288 + $0x4] sm:$0x1]
        %v1054 = vunpack.c.l.bf16 %v1052
        %v1055 = vunpack.c.l.bf16 %v1053
        %s1056 = sld [smem:[#allocation2 + $0x22]]
        %v1057 = vstv %s1056
        %v1058 = vmul.f32 %v1057, %v1054
        %v1059 = vmul.f32 %v1057, %v1055
        %v1062 = vrot.slane %v1058, 1
        %v1063 = vrot.slane %v1059, 1
        %v1064 = vsel %vm725, %v1062, %v1063
        %v1066 = vadd.f32 %v1018, %v1064
        %s1067 = sld [smem:[#allocation2 + $0x46]]
        %v1068 = vstv %s1067
        %v1069 = vmul.f32 %v1068, %v1054
        %v1070 = vmul.f32 %v1068, %v1055
        %v1073 = vrot.slane %v1069, 1
        %v1074 = vrot.slane %v1070, 1
        %v1075 = vsel %vm725, %v1073, %v1074
        %v1077 = vadd.f32 %v1029, %v1075
        %s1078 = sld [smem:[#allocation2 + $0x6a]]
        %v1079 = vstv %s1078
        %v1080 = vmul.f32 %v1079, %v1054
        %v1081 = vmul.f32 %v1079, %v1055
        %v1084 = vrot.slane %v1080, 1
        %v1085 = vrot.slane %v1081, 1
        %v1086 = vsel %vm725, %v1084, %v1085
        %v1088 = vadd.f32 %v1040, %v1086
        %s1089 = sld [smem:[#allocation2 + $0x8e]]
        %v1090 = vstv %s1089
        %v1091 = vmul.f32 %v1090, %v1054
        %v1092 = vmul.f32 %v1090, %v1055
        %v1095 = vrot.slane %v1091, 1
        %v1096 = vrot.slane %v1092, 1
        %v1097 = vsel %vm725, %v1095, %v1096
        %v1099 = vadd.f32 %v1051, %v1097
        %s1100 = sld [smem:[#allocation2 + $0x8]]
        %v1101 = vstv %s1100
        %v1102 = vmul.f32 %v1101, %v717
        %v1103 = vmul.f32 %v1101, %v718
        %v1106 = vrot.slane %v1102, 1
        %v1107 = vrot.slane %v1103, 1
        %v1108 = vsel %vm725, %v1106, %v1107
        %1109 = vrot.lane.b32.xlu0 %v1108, 127
        %v1110 = vpop.permute.xlu0 %1109
        %v1112 = vadd.f32 %v1066, %v1110
        %s1113 = sld [smem:[#allocation2 + $0x2c]]
        %v1114 = vstv %s1113
        %v1115 = vmul.f32 %v1114, %v717
        %v1116 = vmul.f32 %v1114, %v718
        %v1119 = vrot.slane %v1115, 1
        %v1120 = vrot.slane %v1116, 1
        %v1121 = vsel %vm725, %v1119, %v1120
        %1122 = vrot.lane.b32.xlu0 %v1121, 127
        %v1123 = vpop.permute.xlu0 %1122
        %v1125 = vadd.f32 %v1077, %v1123
        %s1126 = sld [smem:[#allocation2 + $0x50]]
        %v1127 = vstv %s1126
        %v1128 = vmul.f32 %v1127, %v717
        %v1129 = vmul.f32 %v1127, %v718
        %v1132 = vrot.slane %v1128, 1
        %v1133 = vrot.slane %v1129, 1
        %v1134 = vsel %vm725, %v1132, %v1133
        %1135 = vrot.lane.b32.xlu0 %v1134, 127
        %v1136 = vpop.permute.xlu0 %1135
        %v1138 = vadd.f32 %v1088, %v1136
        %s1139 = sld [smem:[#allocation2 + $0x74]]
        %v1140 = vstv %s1139
        %v1141 = vmul.f32 %v1140, %v717
        %v1142 = vmul.f32 %v1140, %v718
        %v1145 = vrot.slane %v1141, 1
        %v1146 = vrot.slane %v1142, 1
        %v1147 = vsel %vm725, %v1145, %v1146
        %1148 = vrot.lane.b32.xlu0 %v1147, 127
        %v1149 = vpop.permute.xlu0 %1148
        %v1151 = vadd.f32 %v1099, %v1149
        %s1152 = sld [smem:[#allocation2 + $0x11]]
        %v1153 = vstv %s1152
        %v1154 = vmul.f32 %v1153, %v766
        %v1155 = vmul.f32 %v1153, %v767
        %v1158 = vrot.slane %v1154, 1
        %v1159 = vrot.slane %v1155, 1
        %v1160 = vsel %vm725, %v1158, %v1159
        %1161 = vrot.lane.b32.xlu0 %v1160, 127
        %v1162 = vpop.permute.xlu0 %1161
        %v1164 = vadd.f32 %v1112, %v1162
        %s1165 = sld [smem:[#allocation2 + $0x35]]
        %v1166 = vstv %s1165
        %v1167 = vmul.f32 %v1166, %v766
        %v1168 = vmul.f32 %v1166, %v767
        %v1171 = vrot.slane %v1167, 1
        %v1172 = vrot.slane %v1168, 1
        %v1173 = vsel %vm725, %v1171, %v1172
        %1174 = vrot.lane.b32.xlu0 %v1173, 127
        %v1175 = vpop.permute.xlu0 %1174
        %v1177 = vadd.f32 %v1125, %v1175
        %s1178 = sld [smem:[#allocation2 + $0x59]]
        %v1179 = vstv %s1178
        %v1180 = vmul.f32 %v1179, %v766
        %v1181 = vmul.f32 %v1179, %v767
        %v1184 = vrot.slane %v1180, 1
        %v1185 = vrot.slane %v1181, 1
        %v1186 = vsel %vm725, %v1184, %v1185
        %1187 = vrot.lane.b32.xlu0 %v1186, 127
        %v1188 = vpop.permute.xlu0 %1187
        %v1190 = vadd.f32 %v1138, %v1188
        %s1191 = sld [smem:[#allocation2 + $0x7d]]
        %v1192 = vstv %s1191
        %v1193 = vmul.f32 %v1192, %v766
        %v1194 = vmul.f32 %v1192, %v767
        %v1197 = vrot.slane %v1193, 1
        %v1198 = vrot.slane %v1194, 1
        %v1199 = vsel %vm725, %v1197, %v1198
        %1200 = vrot.lane.b32.xlu0 %v1199, 127
        %v1201 = vpop.permute.xlu0 %1200
        %v1203 = vadd.f32 %v1151, %v1201
        %s1204 = sld [smem:[#allocation2 + $0x1a]]
        %v1205 = vstv %s1204
        %v1206 = vmul.f32 %v1205, %v814
        %v1207 = vmul.f32 %v1205, %v815
        %v1210 = vrot.slane %v1206, 1
        %v1211 = vrot.slane %v1207, 1
        %v1212 = vsel %vm725, %v1210, %v1211
        %1213 = vrot.lane.b32.xlu0 %v1212, 127
        %v1214 = vpop.permute.xlu0 %1213
        %v1216 = vadd.f32 %v1164, %v1214
        %s1217 = sld [smem:[#allocation2 + $0x3e]]
        %v1218 = vstv %s1217
        %v1219 = vmul.f32 %v1218, %v814
        %v1220 = vmul.f32 %v1218, %v815
        %v1223 = vrot.slane %v1219, 1
        %v1224 = vrot.slane %v1220, 1
        %v1225 = vsel %vm725, %v1223, %v1224
        %1226 = vrot.lane.b32.xlu0 %v1225, 127
        %v1227 = vpop.permute.xlu0 %1226
        %v1229 = vadd.f32 %v1177, %v1227
        %s1230 = sld [smem:[#allocation2 + $0x62]]
        %v1231 = vstv %s1230
        %v1232 = vmul.f32 %v1231, %v814
        %v1233 = vmul.f32 %v1231, %v815
        %v1236 = vrot.slane %v1232, 1
        %v1237 = vrot.slane %v1233, 1
        %v1238 = vsel %vm725, %v1236, %v1237
        %1239 = vrot.lane.b32.xlu0 %v1238, 127
        %v1240 = vpop.permute.xlu0 %1239
        %v1242 = vadd.f32 %v1190, %v1240
        %s1243 = sld [smem:[#allocation2 + $0x86]]
        %v1244 = vstv %s1243
        %v1245 = vmul.f32 %v1244, %v814
        %v1246 = vmul.f32 %v1244, %v815
        %v1249 = vrot.slane %v1245, 1
        %v1250 = vrot.slane %v1246, 1
        %v1251 = vsel %vm725, %v1249, %v1250
        %1252 = vrot.lane.b32.xlu0 %v1251, 127
        %v1253 = vpop.permute.xlu0 %1252
        %v1255 = vadd.f32 %v1203, %v1253
        %s1256 = sld [smem:[#allocation2 + $0x23]]
        %v1257 = vstv %s1256
        %v1258 = vmul.f32 %v1257, %v862
        %v1259 = vmul.f32 %v1257, %v863
        %v1262 = vrot.slane %v1258, 1
        %v1263 = vrot.slane %v1259, 1
        %v1264 = vsel %vm725, %v1262, %v1263
        %1265 = vrot.lane.b32.xlu0 %v1264, 127
        %v1266 = vpop.permute.xlu0 %1265
        %v1268 = vadd.f32 %v1216, %v1266
        %s1269 = sld [smem:[#allocation2 + $0x47]]
        %v1270 = vstv %s1269
        %v1271 = vmul.f32 %v1270, %v862
        %v1272 = vmul.f32 %v1270, %v863
        %v1275 = vrot.slane %v1271, 1
        %v1276 = vrot.slane %v1272, 1
        %v1277 = vsel %vm725, %v1275, %v1276
        %1278 = vrot.lane.b32.xlu0 %v1277, 127
        %v1279 = vpop.permute.xlu0 %1278
        %v1281 = vadd.f32 %v1229, %v1279
        %s1282 = sld [smem:[#allocation2 + $0x6b]]
        %v1283 = vstv %s1282
        %v1284 = vmul.f32 %v1283, %v862
        %v1285 = vmul.f32 %v1283, %v863
        %v1288 = vrot.slane %v1284, 1
        %v1289 = vrot.slane %v1285, 1
        %v1290 = vsel %vm725, %v1288, %v1289
        %1291 = vrot.lane.b32.xlu0 %v1290, 127
        %v1292 = vpop.permute.xlu0 %1291
        %v1294 = vadd.f32 %v1242, %v1292
        %s1295 = sld [smem:[#allocation2 + $0x8f]]
        %v1296 = vstv %s1295
        %v1297 = vmul.f32 %v1296, %v862
        %v1298 = vmul.f32 %v1296, %v863
        %v1301 = vrot.slane %v1297, 1
        %v1302 = vrot.slane %v1298, 1
        %v1303 = vsel %vm725, %v1301, %v1302
        %1304 = vrot.lane.b32.xlu0 %v1303, 127
        %v1305 = vpop.permute.xlu0 %1304
        %v1307 = vadd.f32 %v1255, %v1305
        %vm1308 = vcmp.gt.f32.partialorder %v1268, 0.0
        %v1309 = vmul.f32 %v1268, 0.1
        %v1310 = vsel %vm1308, %v1268, %v1309
        %vm1311 = vcmask 64512
        %1312 = vst.msk [vmem:[%s150] sm:$0xff] %vm1311, %v1310
        %vm1313 = vcmp.gt.f32.partialorder %v1281, 0.0
        %v1314 = vmul.f32 %v1281, 0.1
        %v1315 = vsel %vm1313, %v1281, %v1314
        %s1316 = scalar_lea.vmem %s150, 8 [#allocation5]
        %1317 = vst.msk [vmem:[%s1316] sm:$0xff] %vm1311, %v1315
        %vm1318 = vcmp.gt.f32.partialorder %v1294, 0.0
        %v1319 = vmul.f32 %v1294, 0.1
        %v1320 = vsel %vm1318, %v1294, %v1319
        %s1321 = scalar_lea.vmem %s150, 16 [#allocation5]
        %1322 = vst.msk [vmem:[%s1321] sm:$0xff] %vm1311, %v1320
        %vm1323 = vcmp.gt.f32.partialorder %v1307, 0.0
        %v1324 = vmul.f32 %v1307, 0.1
        %v1325 = vsel %vm1323, %v1307, %v1324
        %s1326 = scalar_lea.vmem %s150, 24 [#allocation5]
        %1327 = vst.msk [vmem:[%s1326] sm:$0xff] %vm1311, %v1325
        %s1328 = sand.u32 %s72, 1
        %s1329 = scalar_lea.sflag [#allocation3], %s1328
        %s1330 = sand.u32 %s72, 1
        %s1331 = smul.addr %s1330, 32
        %s1332 = scalar_lea.vmem [#allocation5], %s1331
        // Predicated region
        $region33: #{downsample_forward.1} parent=27 // pred_check
          %p1333 = pneg %p82
        $region34: #{downsample_forward.1} parent=27 // pred_check_branch
          %1335 = sbr.rel (%p1333) target = $region36
        $region35: #{downsample_forward.1} parent=27 // pred_region
          %1337 = vsyncadd %s1329, 0
          %s1338 = smul.addr %s17, 4
          %s1339 = smul.addr %s1338, 8
          %s1340 = scalar_lea.hbm %s2, %s1339
          %s1341 = sshll.u32 %s1332, 4
          %s1342 = int_to_ptr.vmem [resolvable:$true] %s1341
          %s1343 = sshll.u32 %s1340, 4
          %s1344 = int_to_ptr.hbm [resolvable:$true] %s1343
          %1349 = dma.vmem_to_hbm [thread:$0]  %s1342, 512, %s1344, %s1329, 128, 128, 8
        $region36: #{downsample_forward.1} parent=27 // pred_fallthru
          _
      $region28: #{downsample_forward.1} parent=5 // pred_fallthru
        _
      %p1350 = scmp.le.s32.totalorder 2, %s12
      // Predicated region
      $region37: #{downsample_forward.1} parent=5 // pred_check
        %p1351 = pneg %p1350
      $region38: #{downsample_forward.1} parent=5 // pred_check_branch
        %1353 = sbr.rel (%p1351) target = $region40
      $region39: #{downsample_forward.1} parent=5 // pred_region
        %s1354 = ssub.s32 %s12, 2
        // Predicated region
        $region41: #{downsample_forward.1} parent=39 // pred_check
          %p1355 = pneg %p88
        $region42: #{downsample_forward.1} parent=39 // pred_check_branch
          %1357 = sbr.rel (%p1355) target = $region44
        $region43: #{downsample_forward.1} parent=39 // pred_region
          %s1358 = sand.u32 %s73, 1
          %s1359 = scalar_lea.sflag [#allocation3], %s1358
          %s1360 = sand.u32 %s73, 1
          %s1361 = smul.addr %s1360, 32
          %s1362 = scalar_lea.vmem [#allocation5], %s1361
          %1364 = dma.done %s1359, 512
        $region44: #{downsample_forward.1} parent=39 // pred_fallthru
          _
      $region40: #{downsample_forward.1} parent=5 // pred_fallthru
        _
    $region6: #{downsample_forward.1} parent=1 // loop_footer
      %s16 = sadd.s32 1, %s12
    $region7: #{downsample_forward.1} parent=1 // loop_footer_branch
      %11 = sbr.rel target = $region3
    $region8: #{downsample_forward.1} parent=1 // loop_exit
      _
    %1365 = vsyncpa [#allocation3], 1
    %s1366 = scalar_lea.sflag [#allocation3], 1
    %1367 = vsyncpa %s1366, 1
    %1368 = vsyncpa [#allocation4], 1
    %s1369 = scalar_lea.sflag [#allocation4], 1
    %1370 = vsyncpa %s1369, 1

</llo_original>
